<compile_context>
chip_gen: v5e
topology: v5e:2x2
jax: 0.10.0
libtpu: 0.0.40
codegen_flags: <defaults>
</compile_context>

<pallas_src>
import jax
import jax.numpy as jnp
from jax.experimental import pallas as pl
from jax.experimental.pallas import tpu as pltpu

NEG_SLOPE = 0.01   # PyTorch nn.LeakyReLU default

IN_DIM = 784       # MNIST 28*28
HID = 200
OUT = 10

TB = 128           # batch tile: fills a 128-row MXU tile on v5e, fine on v6e/v7x
HID_PAD = 256      # 200 -> 256 (2 x 128 lanes)
OUT_PAD = 128      # 10  -> 128 (lane-dense output, no masked stores)


def _leaky_relu(x):
    return jnp.where(x > 0, x, NEG_SLOPE * x)


def mlp_kernel(x_ref, w1_ref, b1_ref, w2_ref, b2_ref, w3_ref, b3_ref, o_ref):
    # Layer 1: (TB,784)bf16 @ (784,256)bf16 -> f32, bias/act in f32
    h = jnp.dot(x_ref[...], w1_ref[...], preferred_element_type=jnp.float32)
    h = _leaky_relu(h + b1_ref[...])
    # Layer 2: (TB,256) @ (256,256)
    h = jnp.dot(h.astype(jnp.bfloat16), w2_ref[...],
                preferred_element_type=jnp.float32)
    h = _leaky_relu(h + b2_ref[...])
    # Layer 3: (TB,256) @ (256,128)
    h = jnp.dot(h.astype(jnp.bfloat16), w3_ref[...],
                preferred_element_type=jnp.float32)
    h = _leaky_relu(h + b3_ref[...])
    o_ref[...] = h.astype(o_ref.dtype)


def mlp_forward(x, padded_params):
    """x: (B, 784) float32. Returns (B, 10) float32."""
    w1, b1, w2, b2, w3, b3 = padded_params
    batch = x.shape[0]

    # Pad batch to a multiple of TB and cast matmul operand to bf16.
    n_tiles = pl.cdiv(batch, TB)
    batch_pad = n_tiles * TB
    if batch_pad != batch:
        x = jnp.pad(x, ((0, batch_pad - batch), (0, 0)))
    x = x.astype(jnp.bfloat16)

    const = lambda shape: pl.BlockSpec(shape, lambda i: (0, 0))

    out = pl.pallas_call(
        mlp_kernel,
        out_shape=jax.ShapeDtypeStruct((batch_pad, OUT_PAD), jnp.float32),
        grid=(n_tiles,),
        in_specs=[
            pl.BlockSpec((TB, IN_DIM), lambda i: (i, 0)),      # x tile
            const((IN_DIM, HID_PAD)), const((1, HID_PAD)),     # w1, b1 (resident)
            const((HID_PAD, HID_PAD)), const((1, HID_PAD)),    # w2, b2 (resident)
            const((HID_PAD, OUT_PAD)), const((1, OUT_PAD)),    # w3, b3 (resident)
        ],
        out_specs=pl.BlockSpec((TB, OUT_PAD), lambda i: (i, 0)),
        compiler_params=pltpu.CompilerParams(
            dimension_semantics=("parallel",)),
    )(x, w1, b1, w2, b2, w3, b3)

    return out[:batch, :OUT]


def init_params(key):
    """PyTorch-Linear-style init (uniform +/- 1/sqrt(fan_in)); W stored (in, out)."""
    dims = [(IN_DIM, HID), (HID, HID), (HID, OUT)]
    params = []
    for fan_in, fan_out in dims:
        key, kw, kb = jax.random.split(key, 3)
        bound = 1.0 / jnp.sqrt(fan_in)
        w = jax.random.uniform(kw, (fan_in, fan_out), jnp.float32, -bound, bound)
        b = jax.random.uniform(kb, (1, fan_out), jnp.float32, -bound, bound)
        params += [w, b]
    return tuple(params)


def prepare_params(params):
    """Zero-pad to lane-dense shapes; weights -> bf16, biases stay f32."""
    w1, b1, w2, b2, w3, b3 = params
    w1p = jnp.zeros((IN_DIM, HID_PAD), jnp.float32).at[:, :HID].set(w1)
    b1p = jnp.zeros((1, HID_PAD), jnp.float32).at[:, :HID].set(b1)
    w2p = jnp.zeros((HID_PAD, HID_PAD), jnp.float32).at[:HID, :HID].set(w2)
    b2p = jnp.zeros((1, HID_PAD), jnp.float32).at[:, :HID].set(b2)
    w3p = jnp.zeros((HID_PAD, OUT_PAD), jnp.float32).at[:HID, :OUT].set(w3)
    b3p = jnp.zeros((1, OUT_PAD), jnp.float32).at[:, :OUT].set(b3)
    return (w1p.astype(jnp.bfloat16), b1p,
            w2p.astype(jnp.bfloat16), b2p,
            w3p.astype(jnp.bfloat16), b3p)


def reference_f32(x, params):
    w1, b1, w2, b2, w3, b3 = params
    h = jax.nn.leaky_relu(x @ w1 + b1, NEG_SLOPE)
    h = jax.nn.leaky_relu(h @ w2 + b2, NEG_SLOPE)
    h = jax.nn.leaky_relu(h @ w3 + b3, NEG_SLOPE)
    return h


def reference_bf16(x, padded_params):
    """Same math as the kernel (bf16 operands, f32 accumulation/elementwise)."""
    w1, b1, w2, b2, w3, b3 = padded_params
    h = jnp.dot(x.astype(jnp.bfloat16), w1, preferred_element_type=jnp.float32)
    h = jax.nn.leaky_relu(h + b1, NEG_SLOPE)
    h = jnp.dot(h.astype(jnp.bfloat16), w2, preferred_element_type=jnp.float32)
    h = jax.nn.leaky_relu(h + b2, NEG_SLOPE)
    h = jnp.dot(h.astype(jnp.bfloat16), w3, preferred_element_type=jnp.float32)
    h = jax.nn.leaky_relu(h + b3, NEG_SLOPE)
    return h[:, :OUT]


if __name__ == "__main__":
    key = jax.random.PRNGKey(0)
    key, kx = jax.random.split(key)

    batch = 8
    x = jax.random.normal(kx, (batch, IN_DIM), jnp.float32)
    params = init_params(key)
    padded_params = prepare_params(params)

    out = mlp_forward(x, padded_params)
    out = jax.block_until_ready(out)
    assert out.shape == (batch, OUT), out.shape

    # Exact-math check vs a pure-JAX version using the same bf16/f32 recipe.
    ref_bf16 = reference_bf16(x, padded_params)
    assert jnp.allclose(out, ref_bf16, atol=1e-3, rtol=1e-3), "mismatch vs bf16 reference"

    # Loose semantic check vs the full-f32 PyTorch-equivalent reference.
    ref_f32 = reference_f32(x, params)
    assert jnp.allclose(out, ref_f32, atol=5e-2, rtol=0.0), "mismatch vs f32 reference"

    print("KERNEL_OK")
</pallas_src>

<mosaic_0001>
module attributes {stable_mosaic.version = 11 : i64} {
  func.func @mlp_kernel(%arg0: i32, %arg1: memref<128x784xbf16, #tpu.memory_space<vmem>>, %arg2: memref<784x256xbf16, #tpu.memory_space<vmem>>, %arg3: memref<1x256xf32, #tpu.memory_space<vmem>>, %arg4: memref<256x256xbf16, #tpu.memory_space<vmem>>, %arg5: memref<1x256xf32, #tpu.memory_space<vmem>>, %arg6: memref<256x128xbf16, #tpu.memory_space<vmem>>, %arg7: memref<1x128xf32, #tpu.memory_space<vmem>>, %arg8: memref<128x128xf32, #tpu.memory_space<vmem>>) attributes {dimension_semantics = [#tpu.dimension_semantics<parallel>], iteration_bounds = array<i64: 1>, scalar_prefetch = 0 : i64, scratch_operands = 0 : i64, tpu.core_type = #tpu.core_type<tc>, window_params = [{transform_indices = @transform_0, window_bounds = array<i64: 128, 784>}, {pipeline_mode = #tpu.pipeline_mode<synchronous>, transform_indices = @transform_1, window_bounds = array<i64: 784, 256>}, {pipeline_mode = #tpu.pipeline_mode<synchronous>, transform_indices = @transform_2, window_bounds = array<i64: 1, 256>}, {pipeline_mode = #tpu.pipeline_mode<synchronous>, transform_indices = @transform_3, window_bounds = array<i64: 256, 256>}, {pipeline_mode = #tpu.pipeline_mode<synchronous>, transform_indices = @transform_4, window_bounds = array<i64: 1, 256>}, {pipeline_mode = #tpu.pipeline_mode<synchronous>, transform_indices = @transform_5, window_bounds = array<i64: 256, 128>}, {pipeline_mode = #tpu.pipeline_mode<synchronous>, transform_indices = @transform_6, window_bounds = array<i64: 1, 128>}, {transform_indices = @transform_7, window_bounds = array<i64: 128, 128>}]} {
    %c0 = arith.constant 0 : index
    %c0_0 = arith.constant 0 : index
    %0 = vector.load %arg1[%c0, %c0_0] : memref<128x784xbf16, #tpu.memory_space<vmem>>, vector<128x784xbf16>
    %c0_1 = arith.constant 0 : index
    %c0_2 = arith.constant 0 : index
    %1 = vector.load %arg2[%c0_1, %c0_2] : memref<784x256xbf16, #tpu.memory_space<vmem>>, vector<784x256xbf16>
    %cst = arith.constant dense<0.000000e+00> : vector<128x256xf32>
    %2 = tpu.matmul %0, %1, %cst {dimension_numbers = #tpu.dot_dimension_numbers<[1], [0], [0], [1], [0, 0, 1, 1], [], []>} : vector<128x784xbf16>, vector<784x256xbf16>, vector<128x256xf32> -> vector<128x256xf32>
    %c0_3 = arith.constant 0 : index
    %c0_4 = arith.constant 0 : index
    %3 = vector.load %arg3[%c0_3, %c0_4] : memref<1x256xf32, #tpu.memory_space<vmem>>, vector<1x256xf32>
    %4 = vector.broadcast %3 : vector<1x256xf32> to vector<128x256xf32>
    %5 = arith.addf %2, %4 : vector<128x256xf32>
    %cst_5 = arith.constant 0.000000e+00 : f32
    %6 = vector.broadcast %cst_5 : f32 to vector<128x256xf32>
    %7 = arith.cmpf ogt, %5, %6 : vector<128x256xf32>
    %cst_6 = arith.constant 0.00999999977 : f32
    %8 = vector.broadcast %cst_6 : f32 to vector<128x256xf32>
    %9 = arith.mulf %8, %5 : vector<128x256xf32>
    %10 = arith.select %7, %5, %9 : vector<128x256xi1>, vector<128x256xf32>
    %11 = arith.truncf %10 : vector<128x256xf32> to vector<128x256xbf16>
    %c0_7 = arith.constant 0 : index
    %c0_8 = arith.constant 0 : index
    %12 = vector.load %arg4[%c0_7, %c0_8] : memref<256x256xbf16, #tpu.memory_space<vmem>>, vector<256x256xbf16>
    %cst_9 = arith.constant dense<0.000000e+00> : vector<128x256xf32>
    %13 = tpu.matmul %11, %12, %cst_9 {dimension_numbers = #tpu.dot_dimension_numbers<[1], [0], [0], [1], [0, 0, 1, 1], [], []>} : vector<128x256xbf16>, vector<256x256xbf16>, vector<128x256xf32> -> vector<128x256xf32>
    %c0_10 = arith.constant 0 : index
    %c0_11 = arith.constant 0 : index
    %14 = vector.load %arg5[%c0_10, %c0_11] : memref<1x256xf32, #tpu.memory_space<vmem>>, vector<1x256xf32>
    %15 = vector.broadcast %14 : vector<1x256xf32> to vector<128x256xf32>
    %16 = arith.addf %13, %15 : vector<128x256xf32>
    %cst_12 = arith.constant 0.000000e+00 : f32
    %17 = vector.broadcast %cst_12 : f32 to vector<128x256xf32>
    %18 = arith.cmpf ogt, %16, %17 : vector<128x256xf32>
    %cst_13 = arith.constant 0.00999999977 : f32
    %19 = vector.broadcast %cst_13 : f32 to vector<128x256xf32>
    %20 = arith.mulf %19, %16 : vector<128x256xf32>
    %21 = arith.select %18, %16, %20 : vector<128x256xi1>, vector<128x256xf32>
    %22 = arith.truncf %21 : vector<128x256xf32> to vector<128x256xbf16>
    %c0_14 = arith.constant 0 : index
    %c0_15 = arith.constant 0 : index
    %23 = vector.load %arg6[%c0_14, %c0_15] : memref<256x128xbf16, #tpu.memory_space<vmem>>, vector<256x128xbf16>
    %cst_16 = arith.constant dense<0.000000e+00> : vector<128x128xf32>
    %24 = tpu.matmul %22, %23, %cst_16 {dimension_numbers = #tpu.dot_dimension_numbers<[1], [0], [0], [1], [0, 0, 1, 1], [], []>} : vector<128x256xbf16>, vector<256x128xbf16>, vector<128x128xf32> -> vector<128x128xf32>
    %c0_17 = arith.constant 0 : index
    %c0_18 = arith.constant 0 : index
    %25 = vector.load %arg7[%c0_17, %c0_18] : memref<1x128xf32, #tpu.memory_space<vmem>>, vector<1x128xf32>
    %26 = vector.broadcast %25 : vector<1x128xf32> to vector<128x128xf32>
    %27 = arith.addf %24, %26 : vector<128x128xf32>
    %cst_19 = arith.constant 0.000000e+00 : f32
    %28 = vector.broadcast %cst_19 : f32 to vector<128x128xf32>
    %29 = arith.cmpf ogt, %27, %28 : vector<128x128xf32>
    %cst_20 = arith.constant 0.00999999977 : f32
    %30 = vector.broadcast %cst_20 : f32 to vector<128x128xf32>
    %31 = arith.mulf %30, %27 : vector<128x128xf32>
    %32 = arith.select %29, %27, %31 : vector<128x128xi1>, vector<128x128xf32>
    %c0_21 = arith.constant 0 : index
    %c0_22 = arith.constant 0 : index
    %33 = vector.load %arg8[%c0_21, %c0_22] : memref<128x128xf32, #tpu.memory_space<vmem>>, vector<128x128xf32>
    tpu.vector_store %arg8[%c0_21, %c0_22], %32 {strides = array<i32>} : memref<128x128xf32, #tpu.memory_space<vmem>>, vector<128x128xf32>,
    return
  }
  func.func @transform_0(%arg0: i32) -> (i32, i32) {
    %c0_i32 = arith.constant 0 : i32
    %c0_i32_0 = arith.constant 0 : i32
    return %arg0, %c0_i32 : i32, i32
  }
  func.func @transform_1(%arg0: i32) -> (i32, i32) {
    %c0_i32 = arith.constant 0 : i32
    %c0_i32_0 = arith.constant 0 : i32
    %c0_i32_1 = arith.constant 0 : i32
    return %c0_i32, %c0_i32_0 : i32, i32
  }
  func.func @transform_2(%arg0: i32) -> (i32, i32) {
    %c0_i32 = arith.constant 0 : i32
    %c0_i32_0 = arith.constant 0 : i32
    %c0_i32_1 = arith.constant 0 : i32
    return %c0_i32, %c0_i32_0 : i32, i32
  }
  func.func @transform_3(%arg0: i32) -> (i32, i32) {
    %c0_i32 = arith.constant 0 : i32
    %c0_i32_0 = arith.constant 0 : i32
    %c0_i32_1 = arith.constant 0 : i32
    return %c0_i32, %c0_i32_0 : i32, i32
  }
  func.func @transform_4(%arg0: i32) -> (i32, i32) {
    %c0_i32 = arith.constant 0 : i32
    %c0_i32_0 = arith.constant 0 : i32
    %c0_i32_1 = arith.constant 0 : i32
    return %c0_i32, %c0_i32_0 : i32, i32
  }
  func.func @transform_5(%arg0: i32) -> (i32, i32) {
    %c0_i32 = arith.constant 0 : i32
    %c0_i32_0 = arith.constant 0 : i32
    %c0_i32_1 = arith.constant 0 : i32
    return %c0_i32, %c0_i32_0 : i32, i32
  }
  func.func @transform_6(%arg0: i32) -> (i32, i32) {
    %c0_i32 = arith.constant 0 : i32
    %c0_i32_0 = arith.constant 0 : i32
    %c0_i32_1 = arith.constant 0 : i32
    return %c0_i32, %c0_i32_0 : i32, i32
  }
  func.func @transform_7(%arg0: i32) -> (i32, i32) {
    %c0_i32 = arith.constant 0 : i32
    %c0_i32_0 = arith.constant 0 : i32
    return %arg0, %c0_i32 : i32, i32
  }
}

</mosaic_0001>

<llo_original>
// kernel: tpu_custom_call.1
$region0: #{tpu_custom_call.1}
  #allocation0 [shape = 'u32[]', space=smem, size = 0x4, offset = 0x4, fixed_abs, tag = 'smem constant byte address 0x4 - core index']
  #allocation1 [shape = 'u32[72,128]{1,0:T(1,128)}', space=vmem, size = 0x9000, scoped, tag = 'internal scratch']
  %s0 = inlined_call_operand.vmem [shape: bf16[128,784], index: 0, kind: input, shape index: {}]
  %s1 = inlined_call_operand.vmem [shape: bf16[784,256], index: 1, kind: input, shape index: {}]
  %s2 = inlined_call_operand.vmem [shape: f32[1,256], index: 2, kind: input, shape index: {}]
  %s3 = inlined_call_operand.hbm [shape: bf16[256,256], index: 3, kind: input, shape index: {}]
  %s4 = inlined_call_operand.vmem [shape: f32[1,256], index: 4, kind: input, shape index: {}]
  %s5 = inlined_call_operand.hbm [shape: bf16[256,128], index: 5, kind: input, shape index: {}]
  %s6 = inlined_call_operand.vmem [shape: f32[1,128], index: 6, kind: input, shape index: {}]
  %s7 = inlined_call_operand.hbm [shape: f32[128,128], index: 7, kind: output, shape index: {}]
  %s8 = sld [smem:[#allocation0]]
  $region46: #{tpu_custom_call.1} parent=0
    _
  %s10 = ssub.s32 1, %s8
  %s11 = scalar_select 0, %s10, %s8
  $region1: #{tpu_custom_call.1} parent=0
    #allocation2 [shape = 'u8[131072]{0}', space=vmem, size = 0x20000, scoped, tag = 'input window, operand 3, single buffered']
    #allocation3 [shape = 's32[1]{0}', space=sflag, size = 0x4, scoped, tag = 'scoped memory for tpu_custom_call.1']
    #allocation4 [shape = 's32[1]{0}', space=sflag, size = 0x4, scoped, tag = 'scoped memory for tpu_custom_call.1']
    #allocation5 [shape = 'u8[65536]{0}', space=vmem, size = 0x10000, scoped, tag = 'input window, operand 5, single buffered']
    #allocation6 [shape = 's32[1]{0}', space=sflag, size = 0x4, scoped, tag = 'scoped memory for tpu_custom_call.1']
    #allocation7 [shape = 'u8[65536]{0}', space=vmem, size = 0x10000, scoped, tag = 'output window, operand 0, single buffered']
    %12 = vsyncpa [#allocation3], 0
    %13 = vsyncpa [#allocation6], 0
    %14 = vsyncpa [#allocation4], 0
    // Predicated region
    $region2: #{tpu_custom_call.1} parent=1 // pred_check
      _
    $region3: #{tpu_custom_call.1} parent=1 // pred_check_branch
      %16 = sbr.rel (0) target = $region5
    $region4: #{tpu_custom_call.1} parent=1 // pred_region
      _
    $region5: #{tpu_custom_call.1} parent=1 // pred_fallthru
      _
    // Predicated region
    $region6: #{tpu_custom_call.1} parent=1 // pred_check
      _
    $region7: #{tpu_custom_call.1} parent=1 // pred_check_branch
      %18 = sbr.rel (0) target = $region9
    $region8: #{tpu_custom_call.1} parent=1 // pred_region
      _
    $region9: #{tpu_custom_call.1} parent=1 // pred_fallthru
      _
    // Predicated region
    $region10: #{tpu_custom_call.1} parent=1 // pred_check
      _
    $region11: #{tpu_custom_call.1} parent=1 // pred_check_branch
      %20 = sbr.rel (0) target = $region13
    $region12: #{tpu_custom_call.1} parent=1 // pred_region
      _
    $region13: #{tpu_custom_call.1} parent=1 // pred_fallthru
      _
    // Predicated region
    $region14: #{tpu_custom_call.1} parent=1 // pred_check
      _
    $region15: #{tpu_custom_call.1} parent=1 // pred_check_branch
      %22 = sbr.rel (0) target = $region17
    $region16: #{tpu_custom_call.1} parent=1 // pred_region
      %24 = vsyncadd [#allocation3], 0
      %s25 = sshll.u32 %s3, 4
      %s26 = int_to_ptr.hbm [resolvable:$true] %s25
      %s27 = sshll.u32 [#allocation2], 4
      %s28 = int_to_ptr.vmem [resolvable:$true] %s27
      %33 = dma.hbm_to_vmem [thread:$0]  %s26, 4096, %s28, [#allocation3], 128, 128, 8
    $region17: #{tpu_custom_call.1} parent=1 // pred_fallthru
      _
    // Predicated region
    $region18: #{tpu_custom_call.1} parent=1 // pred_check
      _
    $region19: #{tpu_custom_call.1} parent=1 // pred_check_branch
      %35 = sbr.rel (0) target = $region21
    $region20: #{tpu_custom_call.1} parent=1 // pred_region
      _
    $region21: #{tpu_custom_call.1} parent=1 // pred_fallthru
      _
    // Predicated region
    $region22: #{tpu_custom_call.1} parent=1 // pred_check
      _
    $region23: #{tpu_custom_call.1} parent=1 // pred_check_branch
      %37 = sbr.rel (0) target = $region25
    $region24: #{tpu_custom_call.1} parent=1 // pred_region
      %39 = vsyncadd [#allocation6], 0
      %s40 = sshll.u32 %s5, 4
      %s41 = int_to_ptr.hbm [resolvable:$true] %s40
      %s42 = sshll.u32 [#allocation5], 4
      %s43 = int_to_ptr.vmem [resolvable:$true] %s42
      %48 = dma.hbm_to_vmem [thread:$0]  %s41, 2048, %s43, [#allocation6], 64, 64, 4
    $region25: #{tpu_custom_call.1} parent=1 // pred_fallthru
      _
    // Predicated region
    $region26: #{tpu_custom_call.1} parent=1 // pred_check
      _
    $region27: #{tpu_custom_call.1} parent=1 // pred_check_branch
      %50 = sbr.rel (0) target = $region29
    $region28: #{tpu_custom_call.1} parent=1 // pred_region
      _
    $region29: #{tpu_custom_call.1} parent=1 // pred_fallthru
      _
    // Predicated region
    $region30: #{tpu_custom_call.1} parent=1 // pred_check
      _
    $region31: #{tpu_custom_call.1} parent=1 // pred_check_branch
      %52 = sbr.rel (0) target = $region33
    $region32: #{tpu_custom_call.1} parent=1 // pred_region
      %54 = dma.done [#allocation3], 4096
    $region33: #{tpu_custom_call.1} parent=1 // pred_fallthru
      _
    // Predicated region
    $region34: #{tpu_custom_call.1} parent=1 // pred_check
      _
    $region35: #{tpu_custom_call.1} parent=1 // pred_check_branch
      %56 = sbr.rel (0) target = $region37
    $region36: #{tpu_custom_call.1} parent=1 // pred_region
      %58 = dma.done [#allocation6], 2048
    $region37: #{tpu_custom_call.1} parent=1 // pred_fallthru
      _
    %v60 = vld [vmem:[%s0] sm:$0xff]
    %v61 = vld [vmem:[%s0 + $0x8] sm:$0xff]
    %v62 = vld [vmem:[%s0 + $0x10] sm:$0xff]
    %v63 = vld [vmem:[%s0 + $0x18] sm:$0xf]
    %v64 = vld [vmem:[%s0 + $0x1c] sm:$0xff]
    %v65 = vld [vmem:[%s0 + $0x24] sm:$0xff]
    %v66 = vld [vmem:[%s0 + $0x2c] sm:$0xff]
    %v67 = vld [vmem:[%s0 + $0x34] sm:$0xf]
    %v68 = vld [vmem:[%s0 + $0x38] sm:$0xff]
    %v69 = vld [vmem:[%s0 + $0x40] sm:$0xff]
    %v70 = vld [vmem:[%s0 + $0x48] sm:$0xff]
    %v71 = vld [vmem:[%s0 + $0x50] sm:$0xf]
    %v72 = vld [vmem:[%s0 + $0x54] sm:$0xff]
    %v73 = vld [vmem:[%s0 + $0x5c] sm:$0xff]
    %v74 = vld [vmem:[%s0 + $0x64] sm:$0xff]
    %v75 = vld [vmem:[%s0 + $0x6c] sm:$0xf]
    %v76 = vld [vmem:[%s0 + $0x70] sm:$0xff]
    %v77 = vld [vmem:[%s0 + $0x78] sm:$0xff]
    %v78 = vld [vmem:[%s0 + $0x80] sm:$0xff]
    %v79 = vld [vmem:[%s0 + $0x88] sm:$0xf]
    %v80 = vld [vmem:[%s0 + $0x8c] sm:$0xff]
    %v81 = vld [vmem:[%s0 + $0x94] sm:$0xff]
    %v82 = vld [vmem:[%s0 + $0x9c] sm:$0xff]
    %v83 = vld [vmem:[%s0 + $0xa4] sm:$0xf]
    %v84 = vld [vmem:[%s0 + $0xa8] sm:$0xff]
    %v85 = vld [vmem:[%s0 + $0xb0] sm:$0xff]
    %v86 = vld [vmem:[%s0 + $0xb8] sm:$0xff]
    %v87 = vld [vmem:[%s0 + $0xc0] sm:$0xf]
    %v88 = vld [vmem:[%s0 + $0xc4] sm:$0xff]
    %v89 = vld [vmem:[%s0 + $0xcc] sm:$0xff]
    %v90 = vld [vmem:[%s0 + $0xd4] sm:$0xff]
    %v91 = vld [vmem:[%s0 + $0xdc] sm:$0xf]
    %v92 = vld [vmem:[%s0 + $0xe0] sm:$0xff]
    %v93 = vld [vmem:[%s0 + $0xe8] sm:$0xff]
    %v94 = vld [vmem:[%s0 + $0xf0] sm:$0xff]
    %v95 = vld [vmem:[%s0 + $0xf8] sm:$0xf]
    %v96 = vld [vmem:[%s0 + $0xfc] sm:$0xff]
    %v97 = vld [vmem:[%s0 + $0x104] sm:$0xff]
    %v98 = vld [vmem:[%s0 + $0x10c] sm:$0xff]
    %v99 = vld [vmem:[%s0 + $0x114] sm:$0xf]
    %v100 = vld [vmem:[%s0 + $0x118] sm:$0xff]
    %v101 = vld [vmem:[%s0 + $0x120] sm:$0xff]
    %v102 = vld [vmem:[%s0 + $0x128] sm:$0xff]
    %v103 = vld [vmem:[%s0 + $0x130] sm:$0xf]
    %v104 = vld [vmem:[%s0 + $0x134] sm:$0xff]
    %v105 = vld [vmem:[%s0 + $0x13c] sm:$0xff]
    %v106 = vld [vmem:[%s0 + $0x144] sm:$0xff]
    %v107 = vld [vmem:[%s0 + $0x14c] sm:$0xf]
    %v108 = vld [vmem:[%s0 + $0x150] sm:$0xff]
    %v109 = vld [vmem:[%s0 + $0x158] sm:$0xff]
    %v110 = vld [vmem:[%s0 + $0x160] sm:$0xff]
    %v111 = vld [vmem:[%s0 + $0x168] sm:$0xf]
    %v112 = vld [vmem:[%s0 + $0x16c] sm:$0xff]
    %v113 = vld [vmem:[%s0 + $0x174] sm:$0xff]
    %v114 = vld [vmem:[%s0 + $0x17c] sm:$0xff]
    %v115 = vld [vmem:[%s0 + $0x184] sm:$0xf]
    %v116 = vld [vmem:[%s0 + $0x188] sm:$0xff]
    %v117 = vld [vmem:[%s0 + $0x190] sm:$0xff]
    %v118 = vld [vmem:[%s0 + $0x198] sm:$0xff]
    %v119 = vld [vmem:[%s0 + $0x1a0] sm:$0xf]
    %v120 = vld [vmem:[%s0 + $0x1a4] sm:$0xff]
    %v121 = vld [vmem:[%s0 + $0x1ac] sm:$0xff]
    %v122 = vld [vmem:[%s0 + $0x1b4] sm:$0xff]
    %v123 = vld [vmem:[%s0 + $0x1bc] sm:$0xf]
    %v124 = vld [vmem:[%s1] sm:$0xff]
    %v125 = vld [vmem:[%s1 + $0x8] sm:$0xff]
    %v126 = vld [vmem:[%s1 + $0x10] sm:$0xff]
    %v127 = vld [vmem:[%s1 + $0x18] sm:$0xff]
    %v128 = vld [vmem:[%s1 + $0x20] sm:$0xff]
    %v129 = vld [vmem:[%s1 + $0x28] sm:$0xff]
    %v130 = vld [vmem:[%s1 + $0x30] sm:$0xff]
    %v131 = vld [vmem:[%s1 + $0x38] sm:$0xff]
    %v132 = vld [vmem:[%s1 + $0x40] sm:$0xff]
    %v133 = vld [vmem:[%s1 + $0x48] sm:$0xff]
    %v134 = vld [vmem:[%s1 + $0x50] sm:$0xff]
    %v135 = vld [vmem:[%s1 + $0x58] sm:$0xff]
    %v136 = vld [vmem:[%s1 + $0x60] sm:$0xff]
    %v137 = vld [vmem:[%s1 + $0x68] sm:$0xff]
    %v138 = vld [vmem:[%s1 + $0x70] sm:$0xff]
    %v139 = vld [vmem:[%s1 + $0x78] sm:$0xff]
    %v140 = vld [vmem:[%s1 + $0x80] sm:$0xff]
    %v141 = vld [vmem:[%s1 + $0x88] sm:$0xff]
    %v142 = vld [vmem:[%s1 + $0x90] sm:$0xff]
    %v143 = vld [vmem:[%s1 + $0x98] sm:$0xff]
    %v144 = vld [vmem:[%s1 + $0xa0] sm:$0xff]
    %v145 = vld [vmem:[%s1 + $0xa8] sm:$0xff]
    %v146 = vld [vmem:[%s1 + $0xb0] sm:$0xff]
    %v147 = vld [vmem:[%s1 + $0xb8] sm:$0xff]
    %v148 = vld [vmem:[%s1 + $0xc0] sm:$0xff]
    %v149 = vld [vmem:[%s1 + $0xc8] sm:$0xff]
    %v150 = vld [vmem:[%s1 + $0xd0] sm:$0xff]
    %v151 = vld [vmem:[%s1 + $0xd8] sm:$0xff]
    %v152 = vld [vmem:[%s1 + $0xe0] sm:$0xff]
    %v153 = vld [vmem:[%s1 + $0xe8] sm:$0xff]
    %v154 = vld [vmem:[%s1 + $0xf0] sm:$0xff]
    %v155 = vld [vmem:[%s1 + $0xf8] sm:$0xff]
    %v156 = vld [vmem:[%s1 + $0x100] sm:$0xff]
    %v157 = vld [vmem:[%s1 + $0x108] sm:$0xff]
    %v158 = vld [vmem:[%s1 + $0x110] sm:$0xff]
    %v159 = vld [vmem:[%s1 + $0x118] sm:$0xff]
    %v160 = vld [vmem:[%s1 + $0x120] sm:$0xff]
    %v161 = vld [vmem:[%s1 + $0x128] sm:$0xff]
    %v162 = vld [vmem:[%s1 + $0x130] sm:$0xff]
    %v163 = vld [vmem:[%s1 + $0x138] sm:$0xff]
    %v164 = vld [vmem:[%s1 + $0x140] sm:$0xff]
    %v165 = vld [vmem:[%s1 + $0x148] sm:$0xff]
    %v166 = vld [vmem:[%s1 + $0x150] sm:$0xff]
    %v167 = vld [vmem:[%s1 + $0x158] sm:$0xff]
    %v168 = vld [vmem:[%s1 + $0x160] sm:$0xff]
    %v169 = vld [vmem:[%s1 + $0x168] sm:$0xff]
    %v170 = vld [vmem:[%s1 + $0x170] sm:$0xff]
    %v171 = vld [vmem:[%s1 + $0x178] sm:$0xff]
    %v172 = vld [vmem:[%s1 + $0x180] sm:$0xff]
    %v173 = vld [vmem:[%s1 + $0x188] sm:$0xff]
    %v174 = vld [vmem:[%s1 + $0x190] sm:$0xff]
    %v175 = vld [vmem:[%s1 + $0x198] sm:$0xff]
    %v176 = vld [vmem:[%s1 + $0x1a0] sm:$0xff]
    %v177 = vld [vmem:[%s1 + $0x1a8] sm:$0xff]
    %v178 = vld [vmem:[%s1 + $0x1b0] sm:$0xff]
    %v179 = vld [vmem:[%s1 + $0x1b8] sm:$0xff]
    %v180 = vld [vmem:[%s1 + $0x1c0] sm:$0xff]
    %v181 = vld [vmem:[%s1 + $0x1c8] sm:$0xff]
    %v182 = vld [vmem:[%s1 + $0x1d0] sm:$0xff]
    %v183 = vld [vmem:[%s1 + $0x1d8] sm:$0xff]
    %v184 = vld [vmem:[%s1 + $0x1e0] sm:$0xff]
    %v185 = vld [vmem:[%s1 + $0x1e8] sm:$0xff]
    %v186 = vld [vmem:[%s1 + $0x1f0] sm:$0xff]
    %v187 = vld [vmem:[%s1 + $0x1f8] sm:$0xff]
    %v188 = vld [vmem:[%s1 + $0x200] sm:$0xff]
    %v189 = vld [vmem:[%s1 + $0x208] sm:$0xff]
    %v190 = vld [vmem:[%s1 + $0x210] sm:$0xff]
    %v191 = vld [vmem:[%s1 + $0x218] sm:$0xff]
    %v192 = vld [vmem:[%s1 + $0x220] sm:$0xff]
    %v193 = vld [vmem:[%s1 + $0x228] sm:$0xff]
    %v194 = vld [vmem:[%s1 + $0x230] sm:$0xff]
    %v195 = vld [vmem:[%s1 + $0x238] sm:$0xff]
    %v196 = vld [vmem:[%s1 + $0x240] sm:$0xff]
    %v197 = vld [vmem:[%s1 + $0x248] sm:$0xff]
    %v198 = vld [vmem:[%s1 + $0x250] sm:$0xff]
    %v199 = vld [vmem:[%s1 + $0x258] sm:$0xff]
    %v200 = vld [vmem:[%s1 + $0x260] sm:$0xff]
    %v201 = vld [vmem:[%s1 + $0x268] sm:$0xff]
    %v202 = vld [vmem:[%s1 + $0x270] sm:$0xff]
    %v203 = vld [vmem:[%s1 + $0x278] sm:$0xff]
    %v204 = vld [vmem:[%s1 + $0x280] sm:$0xff]
    %v205 = vld [vmem:[%s1 + $0x288] sm:$0xff]
    %v206 = vld [vmem:[%s1 + $0x290] sm:$0xff]
    %v207 = vld [vmem:[%s1 + $0x298] sm:$0xff]
    %v208 = vld [vmem:[%s1 + $0x2a0] sm:$0xff]
    %v209 = vld [vmem:[%s1 + $0x2a8] sm:$0xff]
    %v210 = vld [vmem:[%s1 + $0x2b0] sm:$0xff]
    %v211 = vld [vmem:[%s1 + $0x2b8] sm:$0xff]
    %v212 = vld [vmem:[%s1 + $0x2c0] sm:$0xff]
    %v213 = vld [vmem:[%s1 + $0x2c8] sm:$0xff]
    %v214 = vld [vmem:[%s1 + $0x2d0] sm:$0xff]
    %v215 = vld [vmem:[%s1 + $0x2d8] sm:$0xff]
    %v216 = vld [vmem:[%s1 + $0x2e0] sm:$0xff]
    %v217 = vld [vmem:[%s1 + $0x2e8] sm:$0xff]
    %v218 = vld [vmem:[%s1 + $0x2f0] sm:$0xff]
    %v219 = vld [vmem:[%s1 + $0x2f8] sm:$0xff]
    %v220 = vld [vmem:[%s1 + $0x300] sm:$0xff]
    %v221 = vld [vmem:[%s1 + $0x308] sm:$0xff]
    %v222 = vld [vmem:[%s2] sm:$0x3]
    %v224 = vperm.slane %v222, 0
    %v225 = vperm.slane %v222, 1
    %v292 = vunpack.c.l.b16 %v60
    %v293 = vunpack.c.h.b16 %v60
    %v294 = vunpack.c.l.b16 %v61
    %v295 = vunpack.c.h.b16 %v61
    %v296 = vunpack.c.l.b16 %v62
    %v297 = vunpack.c.h.b16 %v62
    %v298 = vunpack.c.l.b16 %v63
    %v299 = vunpack.c.l.b16 %v64
    %v300 = vunpack.c.h.b16 %v64
    %v301 = vunpack.c.l.b16 %v65
    %v302 = vunpack.c.h.b16 %v65
    %v303 = vunpack.c.l.b16 %v66
    %v304 = vunpack.c.h.b16 %v66
    %v305 = vunpack.c.l.b16 %v67
    %v306 = vunpack.c.l.b16 %v68
    %v307 = vunpack.c.h.b16 %v68
    %v308 = vunpack.c.l.b16 %v69
    %v309 = vunpack.c.h.b16 %v69
    %v310 = vunpack.c.l.b16 %v70
    %v311 = vunpack.c.h.b16 %v70
    %v312 = vunpack.c.l.b16 %v71
    %v313 = vunpack.c.l.b16 %v72
    %v314 = vunpack.c.h.b16 %v72
    %v315 = vunpack.c.l.b16 %v73
    %v316 = vunpack.c.h.b16 %v73
    %v317 = vunpack.c.l.b16 %v74
    %v318 = vunpack.c.h.b16 %v74
    %v319 = vunpack.c.l.b16 %v75
    %v320 = vunpack.c.l.b16 %v76
    %v321 = vunpack.c.h.b16 %v76
    %v322 = vunpack.c.l.b16 %v77
    %v323 = vunpack.c.h.b16 %v77
    %v324 = vunpack.c.l.b16 %v78
    %v325 = vunpack.c.h.b16 %v78
    %v326 = vunpack.c.l.b16 %v79
    %v327 = vunpack.c.l.b16 %v80
    %v328 = vunpack.c.h.b16 %v80
    %v329 = vunpack.c.l.b16 %v81
    %v330 = vunpack.c.h.b16 %v81
    %v331 = vunpack.c.l.b16 %v82
    %v332 = vunpack.c.h.b16 %v82
    %v333 = vunpack.c.l.b16 %v83
    %v334 = vunpack.c.l.b16 %v84
    %v335 = vunpack.c.h.b16 %v84
    %v336 = vunpack.c.l.b16 %v85
    %v337 = vunpack.c.h.b16 %v85
    %v338 = vunpack.c.l.b16 %v86
    %v339 = vunpack.c.h.b16 %v86
    %v340 = vunpack.c.l.b16 %v87
    %v341 = vunpack.c.l.b16 %v88
    %v342 = vunpack.c.h.b16 %v88
    %v343 = vunpack.c.l.b16 %v89
    %v344 = vunpack.c.h.b16 %v89
    %v345 = vunpack.c.l.b16 %v90
    %v346 = vunpack.c.h.b16 %v90
    %v347 = vunpack.c.l.b16 %v91
    %v348 = vunpack.c.l.b16 %v92
    %v349 = vunpack.c.h.b16 %v92
    %v350 = vunpack.c.l.b16 %v93
    %v351 = vunpack.c.h.b16 %v93
    %v352 = vunpack.c.l.b16 %v94
    %v353 = vunpack.c.h.b16 %v94
    %v354 = vunpack.c.l.b16 %v95
    %v355 = vunpack.c.l.b16 %v96
    %v356 = vunpack.c.h.b16 %v96
    %v357 = vunpack.c.l.b16 %v97
    %v358 = vunpack.c.h.b16 %v97
    %v359 = vunpack.c.l.b16 %v98
    %v360 = vunpack.c.h.b16 %v98
    %v361 = vunpack.c.l.b16 %v99
    %v362 = vunpack.c.l.b16 %v100
    %v363 = vunpack.c.h.b16 %v100
    %v364 = vunpack.c.l.b16 %v101
    %v365 = vunpack.c.h.b16 %v101
    %v366 = vunpack.c.l.b16 %v102
    %v367 = vunpack.c.h.b16 %v102
    %v368 = vunpack.c.l.b16 %v103
    %v369 = vunpack.c.l.b16 %v104
    %v370 = vunpack.c.h.b16 %v104
    %v371 = vunpack.c.l.b16 %v105
    %v372 = vunpack.c.h.b16 %v105
    %v373 = vunpack.c.l.b16 %v106
    %v374 = vunpack.c.h.b16 %v106
    %v375 = vunpack.c.l.b16 %v107
    %v376 = vunpack.c.l.b16 %v108
    %v377 = vunpack.c.h.b16 %v108
    %v378 = vunpack.c.l.b16 %v109
    %v379 = vunpack.c.h.b16 %v109
    %v380 = vunpack.c.l.b16 %v110
    %v381 = vunpack.c.h.b16 %v110
    %v382 = vunpack.c.l.b16 %v111
    %v383 = vunpack.c.l.b16 %v112
    %v384 = vunpack.c.h.b16 %v112
    %v385 = vunpack.c.l.b16 %v113
    %v386 = vunpack.c.h.b16 %v113
    %v387 = vunpack.c.l.b16 %v114
    %v388 = vunpack.c.h.b16 %v114
    %v389 = vunpack.c.l.b16 %v115
    %v390 = vunpack.c.l.b16 %v116
    %v391 = vunpack.c.h.b16 %v116
    %v392 = vunpack.c.l.b16 %v117
    %v393 = vunpack.c.h.b16 %v117
    %v394 = vunpack.c.l.b16 %v118
    %v395 = vunpack.c.h.b16 %v118
    %v396 = vunpack.c.l.b16 %v119
    %v397 = vunpack.c.l.b16 %v120
    %v398 = vunpack.c.h.b16 %v120
    %v399 = vunpack.c.l.b16 %v121
    %v400 = vunpack.c.h.b16 %v121
    %v401 = vunpack.c.l.b16 %v122
    %v402 = vunpack.c.h.b16 %v122
    %v403 = vunpack.c.l.b16 %v123
    %v404 = vpack.c.b16 %v299, %v292
    %v405 = vpack.c.b16 %v300, %v293
    %v406 = vpack.c.b16 %v301, %v294
    %v407 = vpack.c.b16 %v302, %v295
    %v408 = vpack.c.b16 %v303, %v296
    %v409 = vpack.c.b16 %v304, %v297
    %v410 = vpack.c.b16 %v305, %v298
    %v411 = vpack.c.b16 %v313, %v306
    %v412 = vpack.c.b16 %v314, %v307
    %v413 = vpack.c.b16 %v315, %v308
    %v414 = vpack.c.b16 %v316, %v309
    %v415 = vpack.c.b16 %v317, %v310
    %v416 = vpack.c.b16 %v318, %v311
    %v417 = vpack.c.b16 %v319, %v312
    %v418 = vpack.c.b16 %v327, %v320
    %v419 = vpack.c.b16 %v328, %v321
    %v420 = vpack.c.b16 %v329, %v322
    %v421 = vpack.c.b16 %v330, %v323
    %v422 = vpack.c.b16 %v331, %v324
    %v423 = vpack.c.b16 %v332, %v325
    %v424 = vpack.c.b16 %v333, %v326
    %v425 = vpack.c.b16 %v341, %v334
    %v426 = vpack.c.b16 %v342, %v335
    %v427 = vpack.c.b16 %v343, %v336
    %v428 = vpack.c.b16 %v344, %v337
    %v429 = vpack.c.b16 %v345, %v338
    %v430 = vpack.c.b16 %v346, %v339
    %v431 = vpack.c.b16 %v347, %v340
    %v432 = vpack.c.b16 %v355, %v348
    %v433 = vpack.c.b16 %v356, %v349
    %v434 = vpack.c.b16 %v357, %v350
    %v435 = vpack.c.b16 %v358, %v351
    %v436 = vpack.c.b16 %v359, %v352
    %v437 = vpack.c.b16 %v360, %v353
    %v438 = vpack.c.b16 %v361, %v354
    %v439 = vpack.c.b16 %v369, %v362
    %v440 = vpack.c.b16 %v370, %v363
    %v441 = vpack.c.b16 %v371, %v364
    %v442 = vpack.c.b16 %v372, %v365
    %v443 = vpack.c.b16 %v373, %v366
    %v444 = vpack.c.b16 %v374, %v367
    %v445 = vpack.c.b16 %v375, %v368
    %v446 = vpack.c.b16 %v383, %v376
    %v447 = vpack.c.b16 %v384, %v377
    %v448 = vpack.c.b16 %v385, %v378
    %v449 = vpack.c.b16 %v386, %v379
    %v450 = vpack.c.b16 %v387, %v380
    %v451 = vpack.c.b16 %v388, %v381
    %v452 = vpack.c.b16 %v389, %v382
    %v453 = vpack.c.b16 %v397, %v390
    %v454 = vpack.c.b16 %v398, %v391
    %v455 = vpack.c.b16 %v399, %v392
    %v456 = vpack.c.b16 %v400, %v393
    %v457 = vpack.c.b16 %v401, %v394
    %v458 = vpack.c.b16 %v402, %v395
    %v459 = vpack.c.b16 %v403, %v396
    %v606 = vunpack.c.l.b16 %v124
    %v607 = vunpack.c.h.b16 %v124
    %v608 = vunpack.c.l.b16 %v125
    %v609 = vunpack.c.h.b16 %v125
    %v610 = vunpack.c.l.b16 %v126
    %v611 = vunpack.c.h.b16 %v126
    %v612 = vunpack.c.l.b16 %v127
    %v613 = vunpack.c.h.b16 %v127
    %v614 = vunpack.c.l.b16 %v128
    %v615 = vunpack.c.h.b16 %v128
    %v616 = vunpack.c.l.b16 %v129
    %v617 = vunpack.c.h.b16 %v129
    %v618 = vunpack.c.l.b16 %v130
    %v619 = vunpack.c.h.b16 %v130
    %v620 = vunpack.c.l.b16 %v131
    %v621 = vunpack.c.h.b16 %v131
    %v622 = vunpack.c.l.b16 %v132
    %v623 = vunpack.c.h.b16 %v132
    %v624 = vunpack.c.l.b16 %v133
    %v625 = vunpack.c.h.b16 %v133
    %v626 = vunpack.c.l.b16 %v134
    %v627 = vunpack.c.h.b16 %v134
    %v628 = vunpack.c.l.b16 %v135
    %v629 = vunpack.c.h.b16 %v135
    %v630 = vunpack.c.l.b16 %v136
    %v631 = vunpack.c.h.b16 %v136
    %v632 = vunpack.c.l.b16 %v137
    %v633 = vunpack.c.h.b16 %v137
    %v634 = vunpack.c.l.b16 %v138
    %v635 = vunpack.c.h.b16 %v138
    %v636 = vunpack.c.l.b16 %v139
    %v637 = vunpack.c.h.b16 %v139
    %v638 = vunpack.c.l.b16 %v140
    %v639 = vunpack.c.h.b16 %v140
    %v640 = vunpack.c.l.b16 %v141
    %v641 = vunpack.c.h.b16 %v141
    %v642 = vunpack.c.l.b16 %v142
    %v643 = vunpack.c.h.b16 %v142
    %v644 = vunpack.c.l.b16 %v143
    %v645 = vunpack.c.h.b16 %v143
    %v646 = vunpack.c.l.b16 %v144
    %v647 = vunpack.c.h.b16 %v144
    %v648 = vunpack.c.l.b16 %v145
    %v649 = vunpack.c.h.b16 %v145
    %v650 = vunpack.c.l.b16 %v146
    %v651 = vunpack.c.h.b16 %v146
    %v652 = vunpack.c.l.b16 %v147
    %v653 = vunpack.c.h.b16 %v147
    %v654 = vunpack.c.l.b16 %v148
    %v655 = vunpack.c.h.b16 %v148
    %v656 = vunpack.c.l.b16 %v149
    %v657 = vunpack.c.h.b16 %v149
    %v658 = vunpack.c.l.b16 %v150
    %v659 = vunpack.c.h.b16 %v150
    %v660 = vunpack.c.l.b16 %v151
    %v661 = vunpack.c.h.b16 %v151
    %v662 = vunpack.c.l.b16 %v152
    %v663 = vunpack.c.h.b16 %v152
    %v664 = vunpack.c.l.b16 %v153
    %v665 = vunpack.c.h.b16 %v153
    %v666 = vunpack.c.l.b16 %v154
    %v667 = vunpack.c.h.b16 %v154
    %v668 = vunpack.c.l.b16 %v155
    %v669 = vunpack.c.h.b16 %v155
    %v670 = vunpack.c.l.b16 %v156
    %v671 = vunpack.c.h.b16 %v156
    %v672 = vunpack.c.l.b16 %v157
    %v673 = vunpack.c.h.b16 %v157
    %v674 = vunpack.c.l.b16 %v158
    %v675 = vunpack.c.h.b16 %v158
    %v676 = vunpack.c.l.b16 %v159
    %v677 = vunpack.c.h.b16 %v159
    %v678 = vunpack.c.l.b16 %v160
    %v679 = vunpack.c.h.b16 %v160
    %v680 = vunpack.c.l.b16 %v161
    %v681 = vunpack.c.h.b16 %v161
    %v682 = vunpack.c.l.b16 %v162
    %v683 = vunpack.c.h.b16 %v162
    %v684 = vunpack.c.l.b16 %v163
    %v685 = vunpack.c.h.b16 %v163
    %v686 = vunpack.c.l.b16 %v164
    %v687 = vunpack.c.h.b16 %v164
    %v688 = vunpack.c.l.b16 %v165
    %v689 = vunpack.c.h.b16 %v165
    %v690 = vunpack.c.l.b16 %v166
    %v691 = vunpack.c.h.b16 %v166
    %v692 = vunpack.c.l.b16 %v167
    %v693 = vunpack.c.h.b16 %v167
    %v694 = vunpack.c.l.b16 %v168
    %v695 = vunpack.c.h.b16 %v168
    %v696 = vunpack.c.l.b16 %v169
    %v697 = vunpack.c.h.b16 %v169
    %v698 = vunpack.c.l.b16 %v170
    %v699 = vunpack.c.h.b16 %v170
    %v700 = vunpack.c.l.b16 %v171
    %v701 = vunpack.c.h.b16 %v171
    %v702 = vunpack.c.l.b16 %v172
    %v703 = vunpack.c.h.b16 %v172
    %v704 = vunpack.c.l.b16 %v173
    %v705 = vunpack.c.h.b16 %v173
    %v706 = vunpack.c.l.b16 %v174
    %v707 = vunpack.c.h.b16 %v174
    %v708 = vunpack.c.l.b16 %v175
    %v709 = vunpack.c.h.b16 %v175
    %v710 = vunpack.c.l.b16 %v176
    %v711 = vunpack.c.h.b16 %v176
    %v712 = vunpack.c.l.b16 %v177
    %v713 = vunpack.c.h.b16 %v177
    %v714 = vunpack.c.l.b16 %v178
    %v715 = vunpack.c.h.b16 %v178
    %v716 = vunpack.c.l.b16 %v179
    %v717 = vunpack.c.h.b16 %v179
    %v718 = vunpack.c.l.b16 %v180
    %v719 = vunpack.c.h.b16 %v180
    %v720 = vunpack.c.l.b16 %v181
    %v721 = vunpack.c.h.b16 %v181
    %v722 = vunpack.c.l.b16 %v182
    %v723 = vunpack.c.h.b16 %v182
    %v724 = vunpack.c.l.b16 %v183
    %v725 = vunpack.c.h.b16 %v183
    %v726 = vunpack.c.l.b16 %v184
    %v727 = vunpack.c.h.b16 %v184
    %v728 = vunpack.c.l.b16 %v185
    %v729 = vunpack.c.h.b16 %v185
    %v730 = vunpack.c.l.b16 %v186
    %v731 = vunpack.c.h.b16 %v186
    %v732 = vunpack.c.l.b16 %v187
    %v733 = vunpack.c.h.b16 %v187
    %v734 = vunpack.c.l.b16 %v188
    %v735 = vunpack.c.h.b16 %v188
    %v736 = vunpack.c.l.b16 %v189
    %v737 = vunpack.c.h.b16 %v189
    %v738 = vunpack.c.l.b16 %v190
    %v739 = vunpack.c.h.b16 %v190
    %v740 = vunpack.c.l.b16 %v191
    %v741 = vunpack.c.h.b16 %v191
    %v742 = vunpack.c.l.b16 %v192
    %v743 = vunpack.c.h.b16 %v192
    %v744 = vunpack.c.l.b16 %v193
    %v745 = vunpack.c.h.b16 %v193
    %v746 = vunpack.c.l.b16 %v194
    %v747 = vunpack.c.h.b16 %v194
    %v748 = vunpack.c.l.b16 %v195
    %v749 = vunpack.c.h.b16 %v195
    %v750 = vunpack.c.l.b16 %v196
    %v751 = vunpack.c.h.b16 %v196
    %v752 = vunpack.c.l.b16 %v197
    %v753 = vunpack.c.h.b16 %v197
    %v754 = vunpack.c.l.b16 %v198
    %v755 = vunpack.c.h.b16 %v198
    %v756 = vunpack.c.l.b16 %v199
    %v757 = vunpack.c.h.b16 %v199
    %v758 = vunpack.c.l.b16 %v200
    %v759 = vunpack.c.h.b16 %v200
    %v760 = vunpack.c.l.b16 %v201
    %v761 = vunpack.c.h.b16 %v201
    %v762 = vunpack.c.l.b16 %v202
    %v763 = vunpack.c.h.b16 %v202
    %v764 = vunpack.c.l.b16 %v203
    %v765 = vunpack.c.h.b16 %v203
    %v766 = vunpack.c.l.b16 %v204
    %v767 = vunpack.c.h.b16 %v204
    %v768 = vunpack.c.l.b16 %v205
    %v769 = vunpack.c.h.b16 %v205
    %v770 = vunpack.c.l.b16 %v206
    %v771 = vunpack.c.h.b16 %v206
    %v772 = vunpack.c.l.b16 %v207
    %v773 = vunpack.c.h.b16 %v207
    %v774 = vunpack.c.l.b16 %v208
    %v775 = vunpack.c.h.b16 %v208
    %v776 = vunpack.c.l.b16 %v209
    %v777 = vunpack.c.h.b16 %v209
    %v778 = vunpack.c.l.b16 %v210
    %v779 = vunpack.c.h.b16 %v210
    %v780 = vunpack.c.l.b16 %v211
    %v781 = vunpack.c.h.b16 %v211
    %v782 = vunpack.c.l.b16 %v212
    %v783 = vunpack.c.h.b16 %v212
    %v784 = vunpack.c.l.b16 %v213
    %v785 = vunpack.c.h.b16 %v213
    %v786 = vunpack.c.l.b16 %v214
    %v787 = vunpack.c.h.b16 %v214
    %v788 = vunpack.c.l.b16 %v215
    %v789 = vunpack.c.h.b16 %v215
    %v790 = vunpack.c.l.b16 %v216
    %v791 = vunpack.c.h.b16 %v216
    %v792 = vunpack.c.l.b16 %v217
    %v793 = vunpack.c.h.b16 %v217
    %v794 = vunpack.c.l.b16 %v218
    %v795 = vunpack.c.h.b16 %v218
    %v796 = vunpack.c.l.b16 %v219
    %v797 = vunpack.c.h.b16 %v219
    %v798 = vunpack.c.l.b16 %v220
    %v799 = vunpack.c.h.b16 %v220
    %v800 = vunpack.c.l.b16 %v221
    %v801 = vunpack.c.h.b16 %v221
    %v802 = vpack.c.b16 %v608, %v606
    %v803 = vpack.c.b16 %v609, %v607
    %v804 = vpack.c.b16 %v612, %v610
    %v805 = vpack.c.b16 %v613, %v611
    %v806 = vpack.c.b16 %v616, %v614
    %v807 = vpack.c.b16 %v617, %v615
    %v808 = vpack.c.b16 %v620, %v618
    %v809 = vpack.c.b16 %v621, %v619
    %v810 = vpack.c.b16 %v624, %v622
    %v811 = vpack.c.b16 %v625, %v623
    %v812 = vpack.c.b16 %v628, %v626
    %v813 = vpack.c.b16 %v629, %v627
    %v814 = vpack.c.b16 %v632, %v630
    %v815 = vpack.c.b16 %v633, %v631
    %v816 = vpack.c.b16 %v636, %v634
    %v817 = vpack.c.b16 %v637, %v635
    %v818 = vpack.c.b16 %v640, %v638
    %v819 = vpack.c.b16 %v641, %v639
    %v820 = vpack.c.b16 %v644, %v642
    %v821 = vpack.c.b16 %v645, %v643
    %v822 = vpack.c.b16 %v648, %v646
    %v823 = vpack.c.b16 %v649, %v647
    %v824 = vpack.c.b16 %v652, %v650
    %v825 = vpack.c.b16 %v653, %v651
    %v826 = vpack.c.b16 %v656, %v654
    %v827 = vpack.c.b16 %v657, %v655
    %v828 = vpack.c.b16 %v660, %v658
    %v829 = vpack.c.b16 %v661, %v659
    %v830 = vpack.c.b16 %v664, %v662
    %v831 = vpack.c.b16 %v665, %v663
    %v832 = vpack.c.b16 %v668, %v666
    %v833 = vpack.c.b16 %v669, %v667
    %v834 = vpack.c.b16 %v672, %v670
    %v835 = vpack.c.b16 %v673, %v671
    %v836 = vpack.c.b16 %v676, %v674
    %v837 = vpack.c.b16 %v677, %v675
    %v838 = vpack.c.b16 %v680, %v678
    %v839 = vpack.c.b16 %v681, %v679
    %v840 = vpack.c.b16 %v684, %v682
    %v841 = vpack.c.b16 %v685, %v683
    %v842 = vpack.c.b16 %v688, %v686
    %v843 = vpack.c.b16 %v689, %v687
    %v844 = vpack.c.b16 %v692, %v690
    %v845 = vpack.c.b16 %v693, %v691
    %v846 = vpack.c.b16 %v696, %v694
    %v847 = vpack.c.b16 %v697, %v695
    %v848 = vpack.c.b16 %v700, %v698
    %v849 = vpack.c.b16 %v701, %v699
    %v850 = vpack.c.b16 %v704, %v702
    %v851 = vpack.c.b16 %v705, %v703
    %v852 = vpack.c.b16 %v708, %v706
    %v853 = vpack.c.b16 %v709, %v707
    %v854 = vpack.c.b16 %v712, %v710
    %v855 = vpack.c.b16 %v713, %v711
    %v856 = vpack.c.b16 %v716, %v714
    %v857 = vpack.c.b16 %v717, %v715
    %v858 = vpack.c.b16 %v720, %v718
    %v859 = vpack.c.b16 %v721, %v719
    %v860 = vpack.c.b16 %v724, %v722
    %v861 = vpack.c.b16 %v725, %v723
    %v862 = vpack.c.b16 %v728, %v726
    %v863 = vpack.c.b16 %v729, %v727
    %v864 = vpack.c.b16 %v732, %v730
    %v865 = vpack.c.b16 %v733, %v731
    %v866 = vpack.c.b16 %v736, %v734
    %v867 = vpack.c.b16 %v737, %v735
    %v868 = vpack.c.b16 %v740, %v738
    %v869 = vpack.c.b16 %v741, %v739
    %v870 = vpack.c.b16 %v744, %v742
    %v871 = vpack.c.b16 %v745, %v743
    %v872 = vpack.c.b16 %v748, %v746
    %v873 = vpack.c.b16 %v749, %v747
    %v874 = vpack.c.b16 %v752, %v750
    %v875 = vpack.c.b16 %v753, %v751
    %v876 = vpack.c.b16 %v756, %v754
    %v877 = vpack.c.b16 %v757, %v755
    %v878 = vpack.c.b16 %v760, %v758
    %v879 = vpack.c.b16 %v761, %v759
    %v880 = vpack.c.b16 %v764, %v762
    %v881 = vpack.c.b16 %v765, %v763
    %v882 = vpack.c.b16 %v768, %v766
    %v883 = vpack.c.b16 %v769, %v767
    %v884 = vpack.c.b16 %v772, %v770
    %v885 = vpack.c.b16 %v773, %v771
    %v886 = vpack.c.b16 %v776, %v774
    %v887 = vpack.c.b16 %v777, %v775
    %v888 = vpack.c.b16 %v780, %v778
    %v889 = vpack.c.b16 %v781, %v779
    %v890 = vpack.c.b16 %v784, %v782
    %v891 = vpack.c.b16 %v785, %v783
    %v892 = vpack.c.b16 %v788, %v786
    %v893 = vpack.c.b16 %v789, %v787
    %v894 = vpack.c.b16 %v792, %v790
    %v895 = vpack.c.b16 %v793, %v791
    %v896 = vpack.c.b16 %v796, %v794
    %v897 = vpack.c.b16 %v797, %v795
    %v898 = vpack.c.b16 %v800, %v798
    %v899 = vpack.c.b16 %v801, %v799
    %vm998 = vcmask 130048
    %v1000 = vsel %vm998, %v410, 0
    %v1003 = vsel %vm998, %v417, 0
    %v1006 = vsel %vm998, %v424, 0
    %v1009 = vsel %vm998, %v431, 0
    %v1012 = vsel %vm998, %v438, 0
    %v1015 = vsel %vm998, %v445, 0
    %v1018 = vsel %vm998, %v452, 0
    %v1021 = vsel %vm998, %v459, 0
    %1023 = vmatpush.bf16.msra.mxu0 %v816
    %1024 = vmatpush.bf16.msra.mxu0 %v814
    %1025 = vmatpush.bf16.msra.mxu0 %v812
    %1026 = vmatpush.bf16.msra.mxu0 %v810
    %1027 = vmatpush.bf16.msra.mxu0 %v808
    %1028 = vmatpush.bf16.msra.mxu0 %v806
    %1029 = vmatpush.bf16.msra.mxu0 %v804
    %1030 = vmatpush.bf16.msra.mxu0 %v802
    %1031 = vmatmul.bf16.gmra.mxu0 %v404
    %v1032 = vpop.f32.mrf.mxu0
    %v1033 = vadd.f32 %v224, %v1032
    %v1034 = vpop.f32.mrf.mxu0
    %v1035 = vadd.f32 %v224, %v1034
    %1036 = vmatmul.bf16.gmra.mxu0 %v411
    %v1037 = vpop.f32.mrf.mxu0
    %v1038 = vadd.f32 %v224, %v1037
    %v1039 = vpop.f32.mrf.mxu0
    %v1040 = vadd.f32 %v224, %v1039
    %1041 = vmatmul.bf16.gmra.mxu0 %v418
    %v1042 = vpop.f32.mrf.mxu0
    %v1043 = vadd.f32 %v224, %v1042
    %v1044 = vpop.f32.mrf.mxu0
    %v1045 = vadd.f32 %v224, %v1044
    %1046 = vmatmul.bf16.gmra.mxu0 %v425
    %v1047 = vpop.f32.mrf.mxu0
    %v1048 = vadd.f32 %v224, %v1047
    %v1049 = vpop.f32.mrf.mxu0
    %v1050 = vadd.f32 %v224, %v1049
    %1051 = vmatmul.bf16.gmra.mxu0 %v432
    %v1052 = vpop.f32.mrf.mxu0
    %v1053 = vadd.f32 %v224, %v1052
    %v1054 = vpop.f32.mrf.mxu0
    %v1055 = vadd.f32 %v224, %v1054
    %1056 = vmatmul.bf16.gmra.mxu0 %v439
    %v1057 = vpop.f32.mrf.mxu0
    %v1058 = vadd.f32 %v224, %v1057
    %v1059 = vpop.f32.mrf.mxu0
    %v1060 = vadd.f32 %v224, %v1059
    %1061 = vmatmul.bf16.gmra.mxu0 %v446
    %v1062 = vpop.f32.mrf.mxu0
    %v1063 = vadd.f32 %v224, %v1062
    %v1064 = vpop.f32.mrf.mxu0
    %v1065 = vadd.f32 %v224, %v1064
    %1066 = vmatmul.bf16.gmra.mxu0 %v453
    %v1067 = vpop.f32.mrf.mxu0
    %v1068 = vadd.f32 %v224, %v1067
    %v1069 = vpop.f32.mrf.mxu0
    %v1070 = vadd.f32 %v224, %v1069
    %1071 = vdwg.mxu0
    %1072 = vmatpush.bf16.msra.mxu0 %v832
    %1073 = vmatpush.bf16.msra.mxu0 %v830
    %1074 = vmatpush.bf16.msra.mxu0 %v828
    %1075 = vmatpush.bf16.msra.mxu0 %v826
    %1076 = vmatpush.bf16.msra.mxu0 %v824
    %1077 = vmatpush.bf16.msra.mxu0 %v822
    %1078 = vmatpush.bf16.msra.mxu0 %v820
    %1079 = vmatpush.bf16.msra.mxu0 %v818
    %1080 = vmatmul.bf16.gmra.mxu0 %v405
    %v1081 = vpop.f32.mrf.mxu0
    %v1082 = vadd.f32 %v1033, %v1081
    %v1083 = vpop.f32.mrf.mxu0
    %v1084 = vadd.f32 %v1035, %v1083
    %1085 = vmatmul.bf16.gmra.mxu0 %v412
    %v1086 = vpop.f32.mrf.mxu0
    %v1087 = vadd.f32 %v1038, %v1086
    %v1088 = vpop.f32.mrf.mxu0
    %v1089 = vadd.f32 %v1040, %v1088
    %1090 = vmatmul.bf16.gmra.mxu0 %v419
    %v1091 = vpop.f32.mrf.mxu0
    %v1092 = vadd.f32 %v1043, %v1091
    %v1093 = vpop.f32.mrf.mxu0
    %v1094 = vadd.f32 %v1045, %v1093
    %1095 = vmatmul.bf16.gmra.mxu0 %v426
    %v1096 = vpop.f32.mrf.mxu0
    %v1097 = vadd.f32 %v1048, %v1096
    %v1098 = vpop.f32.mrf.mxu0
    %v1099 = vadd.f32 %v1050, %v1098
    %1100 = vmatmul.bf16.gmra.mxu0 %v433
    %v1101 = vpop.f32.mrf.mxu0
    %v1102 = vadd.f32 %v1053, %v1101
    %v1103 = vpop.f32.mrf.mxu0
    %v1104 = vadd.f32 %v1055, %v1103
    %1105 = vmatmul.bf16.gmra.mxu0 %v440
    %v1106 = vpop.f32.mrf.mxu0
    %v1107 = vadd.f32 %v1058, %v1106
    %v1108 = vpop.f32.mrf.mxu0
    %v1109 = vadd.f32 %v1060, %v1108
    %1110 = vmatmul.bf16.gmra.mxu0 %v447
    %v1111 = vpop.f32.mrf.mxu0
    %v1112 = vadd.f32 %v1063, %v1111
    %v1113 = vpop.f32.mrf.mxu0
    %v1114 = vadd.f32 %v1065, %v1113
    %1115 = vmatmul.bf16.gmra.mxu0 %v454
    %v1116 = vpop.f32.mrf.mxu0
    %v1117 = vadd.f32 %v1068, %v1116
    %v1118 = vpop.f32.mrf.mxu0
    %v1119 = vadd.f32 %v1070, %v1118
    %1120 = vdwg.mxu0
    %1121 = vmatpush.bf16.msra.mxu0 %v848
    %1122 = vmatpush.bf16.msra.mxu0 %v846
    %1123 = vmatpush.bf16.msra.mxu0 %v844
    %1124 = vmatpush.bf16.msra.mxu0 %v842
    %1125 = vmatpush.bf16.msra.mxu0 %v840
    %1126 = vmatpush.bf16.msra.mxu0 %v838
    %1127 = vmatpush.bf16.msra.mxu0 %v836
    %1128 = vmatpush.bf16.msra.mxu0 %v834
    %1129 = vmatmul.bf16.gmra.mxu0 %v406
    %v1130 = vpop.f32.mrf.mxu0
    %v1131 = vadd.f32 %v1082, %v1130
    %v1132 = vpop.f32.mrf.mxu0
    %v1133 = vadd.f32 %v1084, %v1132
    %1134 = vmatmul.bf16.gmra.mxu0 %v413
    %v1135 = vpop.f32.mrf.mxu0
    %v1136 = vadd.f32 %v1087, %v1135
    %v1137 = vpop.f32.mrf.mxu0
    %v1138 = vadd.f32 %v1089, %v1137
    %1139 = vmatmul.bf16.gmra.mxu0 %v420
    %v1140 = vpop.f32.mrf.mxu0
    %v1141 = vadd.f32 %v1092, %v1140
    %v1142 = vpop.f32.mrf.mxu0
    %v1143 = vadd.f32 %v1094, %v1142
    %1144 = vmatmul.bf16.gmra.mxu0 %v427
    %v1145 = vpop.f32.mrf.mxu0
    %v1146 = vadd.f32 %v1097, %v1145
    %v1147 = vpop.f32.mrf.mxu0
    %v1148 = vadd.f32 %v1099, %v1147
    %1149 = vmatmul.bf16.gmra.mxu0 %v434
    %v1150 = vpop.f32.mrf.mxu0
    %v1151 = vadd.f32 %v1102, %v1150
    %v1152 = vpop.f32.mrf.mxu0
    %v1153 = vadd.f32 %v1104, %v1152
    %1154 = vmatmul.bf16.gmra.mxu0 %v441
    %v1155 = vpop.f32.mrf.mxu0
    %v1156 = vadd.f32 %v1107, %v1155
    %v1157 = vpop.f32.mrf.mxu0
    %v1158 = vadd.f32 %v1109, %v1157
    %1159 = vmatmul.bf16.gmra.mxu0 %v448
    %v1160 = vpop.f32.mrf.mxu0
    %v1161 = vadd.f32 %v1112, %v1160
    %v1162 = vpop.f32.mrf.mxu0
    %v1163 = vadd.f32 %v1114, %v1162
    %1164 = vmatmul.bf16.gmra.mxu0 %v455
    %v1165 = vpop.f32.mrf.mxu0
    %v1166 = vadd.f32 %v1117, %v1165
    %v1167 = vpop.f32.mrf.mxu0
    %v1168 = vadd.f32 %v1119, %v1167
    %1169 = vdwg.mxu0
    %1170 = vmatpush.bf16.msra.mxu0 %v864
    %1171 = vmatpush.bf16.msra.mxu0 %v862
    %1172 = vmatpush.bf16.msra.mxu0 %v860
    %1173 = vmatpush.bf16.msra.mxu0 %v858
    %1174 = vmatpush.bf16.msra.mxu0 %v856
    %1175 = vmatpush.bf16.msra.mxu0 %v854
    %1176 = vmatpush.bf16.msra.mxu0 %v852
    %1177 = vmatpush.bf16.msra.mxu0 %v850
    %1178 = vmatmul.bf16.gmra.mxu0 %v407
    %v1179 = vpop.f32.mrf.mxu0
    %v1180 = vadd.f32 %v1131, %v1179
    %v1181 = vpop.f32.mrf.mxu0
    %v1182 = vadd.f32 %v1133, %v1181
    %1183 = vmatmul.bf16.gmra.mxu0 %v414
    %v1184 = vpop.f32.mrf.mxu0
    %v1185 = vadd.f32 %v1136, %v1184
    %v1186 = vpop.f32.mrf.mxu0
    %v1187 = vadd.f32 %v1138, %v1186
    %1188 = vmatmul.bf16.gmra.mxu0 %v421
    %v1189 = vpop.f32.mrf.mxu0
    %v1190 = vadd.f32 %v1141, %v1189
    %v1191 = vpop.f32.mrf.mxu0
    %v1192 = vadd.f32 %v1143, %v1191
    %1193 = vmatmul.bf16.gmra.mxu0 %v428
    %v1194 = vpop.f32.mrf.mxu0
    %v1195 = vadd.f32 %v1146, %v1194
    %v1196 = vpop.f32.mrf.mxu0
    %v1197 = vadd.f32 %v1148, %v1196
    %1198 = vmatmul.bf16.gmra.mxu0 %v435
    %v1199 = vpop.f32.mrf.mxu0
    %v1200 = vadd.f32 %v1151, %v1199
    %v1201 = vpop.f32.mrf.mxu0
    %v1202 = vadd.f32 %v1153, %v1201
    %1203 = vmatmul.bf16.gmra.mxu0 %v442
    %v1204 = vpop.f32.mrf.mxu0
    %v1205 = vadd.f32 %v1156, %v1204
    %v1206 = vpop.f32.mrf.mxu0
    %v1207 = vadd.f32 %v1158, %v1206
    %1208 = vmatmul.bf16.gmra.mxu0 %v449
    %v1209 = vpop.f32.mrf.mxu0
    %v1210 = vadd.f32 %v1161, %v1209
    %v1211 = vpop.f32.mrf.mxu0
    %v1212 = vadd.f32 %v1163, %v1211
    %1213 = vmatmul.bf16.gmra.mxu0 %v456
    %v1214 = vpop.f32.mrf.mxu0
    %v1215 = vadd.f32 %v1166, %v1214
    %v1216 = vpop.f32.mrf.mxu0
    %v1217 = vadd.f32 %v1168, %v1216
    %1218 = vdwg.mxu0
    %1219 = vmatpush.bf16.msra.mxu0 %v880
    %1220 = vmatpush.bf16.msra.mxu0 %v878
    %1221 = vmatpush.bf16.msra.mxu0 %v876
    %1222 = vmatpush.bf16.msra.mxu0 %v874
    %1223 = vmatpush.bf16.msra.mxu0 %v872
    %1224 = vmatpush.bf16.msra.mxu0 %v870
    %1225 = vmatpush.bf16.msra.mxu0 %v868
    %1226 = vmatpush.bf16.msra.mxu0 %v866
    %1227 = vmatmul.bf16.gmra.mxu0 %v408
    %v1228 = vpop.f32.mrf.mxu0
    %v1229 = vadd.f32 %v1180, %v1228
    %v1230 = vpop.f32.mrf.mxu0
    %v1231 = vadd.f32 %v1182, %v1230
    %1232 = vmatmul.bf16.gmra.mxu0 %v415
    %v1233 = vpop.f32.mrf.mxu0
    %v1234 = vadd.f32 %v1185, %v1233
    %v1235 = vpop.f32.mrf.mxu0
    %v1236 = vadd.f32 %v1187, %v1235
    %1237 = vmatmul.bf16.gmra.mxu0 %v422
    %v1238 = vpop.f32.mrf.mxu0
    %v1239 = vadd.f32 %v1190, %v1238
    %v1240 = vpop.f32.mrf.mxu0
    %v1241 = vadd.f32 %v1192, %v1240
    %1242 = vmatmul.bf16.gmra.mxu0 %v429
    %v1243 = vpop.f32.mrf.mxu0
    %v1244 = vadd.f32 %v1195, %v1243
    %v1245 = vpop.f32.mrf.mxu0
    %v1246 = vadd.f32 %v1197, %v1245
    %1247 = vmatmul.bf16.gmra.mxu0 %v436
    %v1248 = vpop.f32.mrf.mxu0
    %v1249 = vadd.f32 %v1200, %v1248
    %v1250 = vpop.f32.mrf.mxu0
    %v1251 = vadd.f32 %v1202, %v1250
    %1252 = vmatmul.bf16.gmra.mxu0 %v443
    %v1253 = vpop.f32.mrf.mxu0
    %v1254 = vadd.f32 %v1205, %v1253
    %v1255 = vpop.f32.mrf.mxu0
    %v1256 = vadd.f32 %v1207, %v1255
    %1257 = vmatmul.bf16.gmra.mxu0 %v450
    %v1258 = vpop.f32.mrf.mxu0
    %v1259 = vadd.f32 %v1210, %v1258
    %v1260 = vpop.f32.mrf.mxu0
    %v1261 = vadd.f32 %v1212, %v1260
    %1262 = vmatmul.bf16.gmra.mxu0 %v457
    %v1263 = vpop.f32.mrf.mxu0
    %v1264 = vadd.f32 %v1215, %v1263
    %v1265 = vpop.f32.mrf.mxu0
    %v1266 = vadd.f32 %v1217, %v1265
    %1267 = vdwg.mxu0
    %1268 = vmatpush.bf16.msra.mxu0 %v896
    %1269 = vmatpush.bf16.msra.mxu0 %v894
    %1270 = vmatpush.bf16.msra.mxu0 %v892
    %1271 = vmatpush.bf16.msra.mxu0 %v890
    %1272 = vmatpush.bf16.msra.mxu0 %v888
    %1273 = vmatpush.bf16.msra.mxu0 %v886
    %1274 = vmatpush.bf16.msra.mxu0 %v884
    %1275 = vmatpush.bf16.msra.mxu0 %v882
    %1276 = vmatmul.bf16.gmra.mxu0 %v409
    %v1277 = vpop.f32.mrf.mxu0
    %v1278 = vadd.f32 %v1229, %v1277
    %v1279 = vpop.f32.mrf.mxu0
    %v1280 = vadd.f32 %v1231, %v1279
    %1281 = vmatmul.bf16.gmra.mxu0 %v416
    %v1282 = vpop.f32.mrf.mxu0
    %v1283 = vadd.f32 %v1234, %v1282
    %v1284 = vpop.f32.mrf.mxu0
    %v1285 = vadd.f32 %v1236, %v1284
    %1286 = vmatmul.bf16.gmra.mxu0 %v423
    %v1287 = vpop.f32.mrf.mxu0
    %v1288 = vadd.f32 %v1239, %v1287
    %v1289 = vpop.f32.mrf.mxu0
    %v1290 = vadd.f32 %v1241, %v1289
    %1291 = vmatmul.bf16.gmra.mxu0 %v430
    %v1292 = vpop.f32.mrf.mxu0
    %v1293 = vadd.f32 %v1244, %v1292
    %v1294 = vpop.f32.mrf.mxu0
    %v1295 = vadd.f32 %v1246, %v1294
    %1296 = vmatmul.bf16.gmra.mxu0 %v437
    %v1297 = vpop.f32.mrf.mxu0
    %v1298 = vadd.f32 %v1249, %v1297
    %v1299 = vpop.f32.mrf.mxu0
    %v1300 = vadd.f32 %v1251, %v1299
    %1301 = vmatmul.bf16.gmra.mxu0 %v444
    %v1302 = vpop.f32.mrf.mxu0
    %v1303 = vadd.f32 %v1254, %v1302
    %v1304 = vpop.f32.mrf.mxu0
    %v1305 = vadd.f32 %v1256, %v1304
    %1306 = vmatmul.bf16.gmra.mxu0 %v451
    %v1307 = vpop.f32.mrf.mxu0
    %v1308 = vadd.f32 %v1259, %v1307
    %v1309 = vpop.f32.mrf.mxu0
    %v1310 = vadd.f32 %v1261, %v1309
    %1311 = vmatmul.bf16.gmra.mxu0 %v458
    %v1312 = vpop.f32.mrf.mxu0
    %v1313 = vadd.f32 %v1264, %v1312
    %v1314 = vpop.f32.mrf.mxu0
    %v1315 = vadd.f32 %v1266, %v1314
    %1316 = vdwg.mxu0
    %1317 = vmatpush.bf16.msra.mxu0 0
    %1318 = vmatpush.bf16.msra.mxu0 0
    %1319 = vmatpush.bf16.msra.mxu0 0
    %1320 = vmatpush.bf16.msra.mxu0 0
    %1321 = vmatpush.bf16.msra.mxu0 0
    %1322 = vmatpush.bf16.msra.mxu0 0
    %1323 = vmatpush.bf16.msra.mxu0 0
    %1324 = vmatpush.bf16.msra.mxu0 %v898
    %1325 = vmatmul.bf16.gmra.mxu0 %v1000
    %v1326 = vpop.f32.mrf.mxu0
    %v1327 = vadd.f32 %v1278, %v1326
    %v1328 = vpop.f32.mrf.mxu0
    %v1329 = vadd.f32 %v1280, %v1328
    %1330 = vmatmul.bf16.gmra.mxu0 %v1003
    %v1331 = vpop.f32.mrf.mxu0
    %v1332 = vadd.f32 %v1283, %v1331
    %v1333 = vpop.f32.mrf.mxu0
    %v1334 = vadd.f32 %v1285, %v1333
    %1335 = vmatmul.bf16.gmra.mxu0 %v1006
    %v1336 = vpop.f32.mrf.mxu0
    %v1337 = vadd.f32 %v1288, %v1336
    %v1338 = vpop.f32.mrf.mxu0
    %v1339 = vadd.f32 %v1290, %v1338
    %1340 = vmatmul.bf16.gmra.mxu0 %v1009
    %v1341 = vpop.f32.mrf.mxu0
    %v1342 = vadd.f32 %v1293, %v1341
    %v1343 = vpop.f32.mrf.mxu0
    %v1344 = vadd.f32 %v1295, %v1343
    %1345 = vmatmul.bf16.gmra.mxu0 %v1012
    %v1346 = vpop.f32.mrf.mxu0
    %v1347 = vadd.f32 %v1298, %v1346
    %v1348 = vpop.f32.mrf.mxu0
    %v1349 = vadd.f32 %v1300, %v1348
    %1350 = vmatmul.bf16.gmra.mxu0 %v1015
    %v1351 = vpop.f32.mrf.mxu0
    %v1352 = vadd.f32 %v1303, %v1351
    %v1353 = vpop.f32.mrf.mxu0
    %v1354 = vadd.f32 %v1305, %v1353
    %1355 = vmatmul.bf16.gmra.mxu0 %v1018
    %v1356 = vpop.f32.mrf.mxu0
    %v1357 = vadd.f32 %v1308, %v1356
    %v1358 = vpop.f32.mrf.mxu0
    %v1359 = vadd.f32 %v1310, %v1358
    %1360 = vmatmul.bf16.gmra.mxu0 %v1021
    %v1361 = vpop.f32.mrf.mxu0
    %v1362 = vadd.f32 %v1313, %v1361
    %v1363 = vpop.f32.mrf.mxu0
    %v1364 = vadd.f32 %v1315, %v1363
    %1365 = vdwg.mxu0
    %1366 = vmatpush.bf16.msra.mxu0 %v817
    %1367 = vmatpush.bf16.msra.mxu0 %v815
    %1368 = vmatpush.bf16.msra.mxu0 %v813
    %1369 = vmatpush.bf16.msra.mxu0 %v811
    %1370 = vmatpush.bf16.msra.mxu0 %v809
    %1371 = vmatpush.bf16.msra.mxu0 %v807
    %1372 = vmatpush.bf16.msra.mxu0 %v805
    %1373 = vmatpush.bf16.msra.mxu0 %v803
    %1374 = vmatmul.bf16.gmra.mxu0 %v404
    %v1375 = vpop.f32.mrf.mxu0
    %v1376 = vadd.f32 %v225, %v1375
    %v1377 = vpop.f32.mrf.mxu0
    %v1378 = vadd.f32 %v225, %v1377
    %1379 = vmatmul.bf16.gmra.mxu0 %v411
    %v1380 = vpop.f32.mrf.mxu0
    %v1381 = vadd.f32 %v225, %v1380
    %v1382 = vpop.f32.mrf.mxu0
    %v1383 = vadd.f32 %v225, %v1382
    %1384 = vmatmul.bf16.gmra.mxu0 %v418
    %v1385 = vpop.f32.mrf.mxu0
    %v1386 = vadd.f32 %v225, %v1385
    %v1387 = vpop.f32.mrf.mxu0
    %v1388 = vadd.f32 %v225, %v1387
    %1389 = vmatmul.bf16.gmra.mxu0 %v425
    %v1390 = vpop.f32.mrf.mxu0
    %v1391 = vadd.f32 %v225, %v1390
    %v1392 = vpop.f32.mrf.mxu0
    %v1393 = vadd.f32 %v225, %v1392
    %1394 = vmatmul.bf16.gmra.mxu0 %v432
    %v1395 = vpop.f32.mrf.mxu0
    %v1396 = vadd.f32 %v225, %v1395
    %v1397 = vpop.f32.mrf.mxu0
    %v1398 = vadd.f32 %v225, %v1397
    %1399 = vmatmul.bf16.gmra.mxu0 %v439
    %v1400 = vpop.f32.mrf.mxu0
    %v1401 = vadd.f32 %v225, %v1400
    %v1402 = vpop.f32.mrf.mxu0
    %v1403 = vadd.f32 %v225, %v1402
    %1404 = vmatmul.bf16.gmra.mxu0 %v446
    %v1405 = vpop.f32.mrf.mxu0
    %v1406 = vadd.f32 %v225, %v1405
    %v1407 = vpop.f32.mrf.mxu0
    %v1408 = vadd.f32 %v225, %v1407
    %1409 = vmatmul.bf16.gmra.mxu0 %v453
    %v1410 = vpop.f32.mrf.mxu0
    %v1411 = vadd.f32 %v225, %v1410
    %v1412 = vpop.f32.mrf.mxu0
    %v1413 = vadd.f32 %v225, %v1412
    %1414 = vdwg.mxu0
    %1415 = vmatpush.bf16.msra.mxu0 %v833
    %1416 = vmatpush.bf16.msra.mxu0 %v831
    %1417 = vmatpush.bf16.msra.mxu0 %v829
    %1418 = vmatpush.bf16.msra.mxu0 %v827
    %1419 = vmatpush.bf16.msra.mxu0 %v825
    %1420 = vmatpush.bf16.msra.mxu0 %v823
    %1421 = vmatpush.bf16.msra.mxu0 %v821
    %1422 = vmatpush.bf16.msra.mxu0 %v819
    %1423 = vmatmul.bf16.gmra.mxu0 %v405
    %v1424 = vpop.f32.mrf.mxu0
    %v1425 = vadd.f32 %v1376, %v1424
    %v1426 = vpop.f32.mrf.mxu0
    %v1427 = vadd.f32 %v1378, %v1426
    %1428 = vmatmul.bf16.gmra.mxu0 %v412
    %v1429 = vpop.f32.mrf.mxu0
    %v1430 = vadd.f32 %v1381, %v1429
    %v1431 = vpop.f32.mrf.mxu0
    %v1432 = vadd.f32 %v1383, %v1431
    %1433 = vmatmul.bf16.gmra.mxu0 %v419
    %v1434 = vpop.f32.mrf.mxu0
    %v1435 = vadd.f32 %v1386, %v1434
    %v1436 = vpop.f32.mrf.mxu0
    %v1437 = vadd.f32 %v1388, %v1436
    %1438 = vmatmul.bf16.gmra.mxu0 %v426
    %v1439 = vpop.f32.mrf.mxu0
    %v1440 = vadd.f32 %v1391, %v1439
    %v1441 = vpop.f32.mrf.mxu0
    %v1442 = vadd.f32 %v1393, %v1441
    %1443 = vmatmul.bf16.gmra.mxu0 %v433
    %v1444 = vpop.f32.mrf.mxu0
    %v1445 = vadd.f32 %v1396, %v1444
    %v1446 = vpop.f32.mrf.mxu0
    %v1447 = vadd.f32 %v1398, %v1446
    %1448 = vmatmul.bf16.gmra.mxu0 %v440
    %v1449 = vpop.f32.mrf.mxu0
    %v1450 = vadd.f32 %v1401, %v1449
    %v1451 = vpop.f32.mrf.mxu0
    %v1452 = vadd.f32 %v1403, %v1451
    %1453 = vmatmul.bf16.gmra.mxu0 %v447
    %v1454 = vpop.f32.mrf.mxu0
    %v1455 = vadd.f32 %v1406, %v1454
    %v1456 = vpop.f32.mrf.mxu0
    %v1457 = vadd.f32 %v1408, %v1456
    %1458 = vmatmul.bf16.gmra.mxu0 %v454
    %v1459 = vpop.f32.mrf.mxu0
    %v1460 = vadd.f32 %v1411, %v1459
    %v1461 = vpop.f32.mrf.mxu0
    %v1462 = vadd.f32 %v1413, %v1461
    %1463 = vdwg.mxu0
    %1464 = vmatpush.bf16.msra.mxu0 %v849
    %1465 = vmatpush.bf16.msra.mxu0 %v847
    %1466 = vmatpush.bf16.msra.mxu0 %v845
    %1467 = vmatpush.bf16.msra.mxu0 %v843
    %1468 = vmatpush.bf16.msra.mxu0 %v841
    %1469 = vmatpush.bf16.msra.mxu0 %v839
    %1470 = vmatpush.bf16.msra.mxu0 %v837
    %1471 = vmatpush.bf16.msra.mxu0 %v835
    %1472 = vmatmul.bf16.gmra.mxu0 %v406
    %v1473 = vpop.f32.mrf.mxu0
    %v1474 = vadd.f32 %v1425, %v1473
    %v1475 = vpop.f32.mrf.mxu0
    %v1476 = vadd.f32 %v1427, %v1475
    %1477 = vmatmul.bf16.gmra.mxu0 %v413
    %v1478 = vpop.f32.mrf.mxu0
    %v1479 = vadd.f32 %v1430, %v1478
    %v1480 = vpop.f32.mrf.mxu0
    %v1481 = vadd.f32 %v1432, %v1480
    %1482 = vmatmul.bf16.gmra.mxu0 %v420
    %v1483 = vpop.f32.mrf.mxu0
    %v1484 = vadd.f32 %v1435, %v1483
    %v1485 = vpop.f32.mrf.mxu0
    %v1486 = vadd.f32 %v1437, %v1485
    %1487 = vmatmul.bf16.gmra.mxu0 %v427
    %v1488 = vpop.f32.mrf.mxu0
    %v1489 = vadd.f32 %v1440, %v1488
    %v1490 = vpop.f32.mrf.mxu0
    %v1491 = vadd.f32 %v1442, %v1490
    %1492 = vmatmul.bf16.gmra.mxu0 %v434
    %v1493 = vpop.f32.mrf.mxu0
    %v1494 = vadd.f32 %v1445, %v1493
    %v1495 = vpop.f32.mrf.mxu0
    %v1496 = vadd.f32 %v1447, %v1495
    %1497 = vmatmul.bf16.gmra.mxu0 %v441
    %v1498 = vpop.f32.mrf.mxu0
    %v1499 = vadd.f32 %v1450, %v1498
    %v1500 = vpop.f32.mrf.mxu0
    %v1501 = vadd.f32 %v1452, %v1500
    %1502 = vmatmul.bf16.gmra.mxu0 %v448
    %v1503 = vpop.f32.mrf.mxu0
    %v1504 = vadd.f32 %v1455, %v1503
    %v1505 = vpop.f32.mrf.mxu0
    %v1506 = vadd.f32 %v1457, %v1505
    %1507 = vmatmul.bf16.gmra.mxu0 %v455
    %v1508 = vpop.f32.mrf.mxu0
    %v1509 = vadd.f32 %v1460, %v1508
    %v1510 = vpop.f32.mrf.mxu0
    %v1511 = vadd.f32 %v1462, %v1510
    %1512 = vdwg.mxu0
    %1513 = vmatpush.bf16.msra.mxu0 %v865
    %1514 = vmatpush.bf16.msra.mxu0 %v863
    %1515 = vmatpush.bf16.msra.mxu0 %v861
    %1516 = vmatpush.bf16.msra.mxu0 %v859
    %1517 = vmatpush.bf16.msra.mxu0 %v857
    %1518 = vmatpush.bf16.msra.mxu0 %v855
    %1519 = vmatpush.bf16.msra.mxu0 %v853
    %1520 = vmatpush.bf16.msra.mxu0 %v851
    %1521 = vmatmul.bf16.gmra.mxu0 %v407
    %v1522 = vpop.f32.mrf.mxu0
    %v1523 = vadd.f32 %v1474, %v1522
    %v1524 = vpop.f32.mrf.mxu0
    %v1525 = vadd.f32 %v1476, %v1524
    %1526 = vmatmul.bf16.gmra.mxu0 %v414
    %v1527 = vpop.f32.mrf.mxu0
    %v1528 = vadd.f32 %v1479, %v1527
    %v1529 = vpop.f32.mrf.mxu0
    %v1530 = vadd.f32 %v1481, %v1529
    %1531 = vmatmul.bf16.gmra.mxu0 %v421
    %v1532 = vpop.f32.mrf.mxu0
    %v1533 = vadd.f32 %v1484, %v1532
    %v1534 = vpop.f32.mrf.mxu0
    %v1535 = vadd.f32 %v1486, %v1534
    %1536 = vmatmul.bf16.gmra.mxu0 %v428
    %v1537 = vpop.f32.mrf.mxu0
    %v1538 = vadd.f32 %v1489, %v1537
    %v1539 = vpop.f32.mrf.mxu0
    %v1540 = vadd.f32 %v1491, %v1539
    %1541 = vmatmul.bf16.gmra.mxu0 %v435
    %v1542 = vpop.f32.mrf.mxu0
    %v1543 = vadd.f32 %v1494, %v1542
    %v1544 = vpop.f32.mrf.mxu0
    %v1545 = vadd.f32 %v1496, %v1544
    %1546 = vmatmul.bf16.gmra.mxu0 %v442
    %v1547 = vpop.f32.mrf.mxu0
    %v1548 = vadd.f32 %v1499, %v1547
    %v1549 = vpop.f32.mrf.mxu0
    %v1550 = vadd.f32 %v1501, %v1549
    %1551 = vmatmul.bf16.gmra.mxu0 %v449
    %v1552 = vpop.f32.mrf.mxu0
    %v1553 = vadd.f32 %v1504, %v1552
    %v1554 = vpop.f32.mrf.mxu0
    %v1555 = vadd.f32 %v1506, %v1554
    %1556 = vmatmul.bf16.gmra.mxu0 %v456
    %v1557 = vpop.f32.mrf.mxu0
    %v1558 = vadd.f32 %v1509, %v1557
    %v1559 = vpop.f32.mrf.mxu0
    %v1560 = vadd.f32 %v1511, %v1559
    %1561 = vdwg.mxu0
    %1562 = vmatpush.bf16.msra.mxu0 %v881
    %1563 = vmatpush.bf16.msra.mxu0 %v879
    %1564 = vmatpush.bf16.msra.mxu0 %v877
    %1565 = vmatpush.bf16.msra.mxu0 %v875
    %1566 = vmatpush.bf16.msra.mxu0 %v873
    %1567 = vmatpush.bf16.msra.mxu0 %v871
    %1568 = vmatpush.bf16.msra.mxu0 %v869
    %1569 = vmatpush.bf16.msra.mxu0 %v867
    %1570 = vmatmul.bf16.gmra.mxu0 %v408
    %v1571 = vpop.f32.mrf.mxu0
    %v1572 = vadd.f32 %v1523, %v1571
    %v1573 = vpop.f32.mrf.mxu0
    %v1574 = vadd.f32 %v1525, %v1573
    %1575 = vmatmul.bf16.gmra.mxu0 %v415
    %v1576 = vpop.f32.mrf.mxu0
    %v1577 = vadd.f32 %v1528, %v1576
    %v1578 = vpop.f32.mrf.mxu0
    %v1579 = vadd.f32 %v1530, %v1578
    %1580 = vmatmul.bf16.gmra.mxu0 %v422
    %v1581 = vpop.f32.mrf.mxu0
    %v1582 = vadd.f32 %v1533, %v1581
    %v1583 = vpop.f32.mrf.mxu0
    %v1584 = vadd.f32 %v1535, %v1583
    %1585 = vmatmul.bf16.gmra.mxu0 %v429
    %v1586 = vpop.f32.mrf.mxu0
    %v1587 = vadd.f32 %v1538, %v1586
    %v1588 = vpop.f32.mrf.mxu0
    %v1589 = vadd.f32 %v1540, %v1588
    %1590 = vmatmul.bf16.gmra.mxu0 %v436
    %v1591 = vpop.f32.mrf.mxu0
    %v1592 = vadd.f32 %v1543, %v1591
    %v1593 = vpop.f32.mrf.mxu0
    %v1594 = vadd.f32 %v1545, %v1593
    %1595 = vmatmul.bf16.gmra.mxu0 %v443
    %v1596 = vpop.f32.mrf.mxu0
    %v1597 = vadd.f32 %v1548, %v1596
    %v1598 = vpop.f32.mrf.mxu0
    %v1599 = vadd.f32 %v1550, %v1598
    %1600 = vmatmul.bf16.gmra.mxu0 %v450
    %v1601 = vpop.f32.mrf.mxu0
    %v1602 = vadd.f32 %v1553, %v1601
    %v1603 = vpop.f32.mrf.mxu0
    %v1604 = vadd.f32 %v1555, %v1603
    %1605 = vmatmul.bf16.gmra.mxu0 %v457
    %v1606 = vpop.f32.mrf.mxu0
    %v1607 = vadd.f32 %v1558, %v1606
    %v1608 = vpop.f32.mrf.mxu0
    %v1609 = vadd.f32 %v1560, %v1608
    %1610 = vdwg.mxu0
    %1611 = vmatpush.bf16.msra.mxu0 %v897
    %1612 = vmatpush.bf16.msra.mxu0 %v895
    %1613 = vmatpush.bf16.msra.mxu0 %v893
    %1614 = vmatpush.bf16.msra.mxu0 %v891
    %1615 = vmatpush.bf16.msra.mxu0 %v889
    %1616 = vmatpush.bf16.msra.mxu0 %v887
    %1617 = vmatpush.bf16.msra.mxu0 %v885
    %1618 = vmatpush.bf16.msra.mxu0 %v883
    %1619 = vmatmul.bf16.gmra.mxu0 %v409
    %v1620 = vpop.f32.mrf.mxu0
    %v1621 = vadd.f32 %v1572, %v1620
    %v1622 = vpop.f32.mrf.mxu0
    %v1623 = vadd.f32 %v1574, %v1622
    %1624 = vmatmul.bf16.gmra.mxu0 %v416
    %v1625 = vpop.f32.mrf.mxu0
    %v1626 = vadd.f32 %v1577, %v1625
    %v1627 = vpop.f32.mrf.mxu0
    %v1628 = vadd.f32 %v1579, %v1627
    %1629 = vmatmul.bf16.gmra.mxu0 %v423
    %v1630 = vpop.f32.mrf.mxu0
    %v1631 = vadd.f32 %v1582, %v1630
    %v1632 = vpop.f32.mrf.mxu0
    %v1633 = vadd.f32 %v1584, %v1632
    %1634 = vmatmul.bf16.gmra.mxu0 %v430
    %v1635 = vpop.f32.mrf.mxu0
    %v1636 = vadd.f32 %v1587, %v1635
    %v1637 = vpop.f32.mrf.mxu0
    %v1638 = vadd.f32 %v1589, %v1637
    %1639 = vmatmul.bf16.gmra.mxu0 %v437
    %v1640 = vpop.f32.mrf.mxu0
    %v1641 = vadd.f32 %v1592, %v1640
    %v1642 = vpop.f32.mrf.mxu0
    %v1643 = vadd.f32 %v1594, %v1642
    %1644 = vmatmul.bf16.gmra.mxu0 %v444
    %v1645 = vpop.f32.mrf.mxu0
    %v1646 = vadd.f32 %v1597, %v1645
    %v1647 = vpop.f32.mrf.mxu0
    %v1648 = vadd.f32 %v1599, %v1647
    %1649 = vmatmul.bf16.gmra.mxu0 %v451
    %v1650 = vpop.f32.mrf.mxu0
    %v1651 = vadd.f32 %v1602, %v1650
    %v1652 = vpop.f32.mrf.mxu0
    %v1653 = vadd.f32 %v1604, %v1652
    %1654 = vmatmul.bf16.gmra.mxu0 %v458
    %v1655 = vpop.f32.mrf.mxu0
    %v1656 = vadd.f32 %v1607, %v1655
    %v1657 = vpop.f32.mrf.mxu0
    %v1658 = vadd.f32 %v1609, %v1657
    %1659 = vdwg.mxu0
    %1660 = vmatpush.bf16.msra.mxu0 0
    %1661 = vmatpush.bf16.msra.mxu0 0
    %1662 = vmatpush.bf16.msra.mxu0 0
    %1663 = vmatpush.bf16.msra.mxu0 0
    %1664 = vmatpush.bf16.msra.mxu0 0
    %1665 = vmatpush.bf16.msra.mxu0 0
    %1666 = vmatpush.bf16.msra.mxu0 0
    %1667 = vmatpush.bf16.msra.mxu0 %v899
    %1668 = vmatmul.bf16.gmra.mxu0 %v1000
    %v1669 = vpop.f32.mrf.mxu0
    %v1670 = vadd.f32 %v1621, %v1669
    %v1671 = vpop.f32.mrf.mxu0
    %v1672 = vadd.f32 %v1623, %v1671
    %1673 = vmatmul.bf16.gmra.mxu0 %v1003
    %v1674 = vpop.f32.mrf.mxu0
    %v1675 = vadd.f32 %v1626, %v1674
    %v1676 = vpop.f32.mrf.mxu0
    %v1677 = vadd.f32 %v1628, %v1676
    %1678 = vmatmul.bf16.gmra.mxu0 %v1006
    %v1679 = vpop.f32.mrf.mxu0
    %v1680 = vadd.f32 %v1631, %v1679
    %v1681 = vpop.f32.mrf.mxu0
    %v1682 = vadd.f32 %v1633, %v1681
    %1683 = vmatmul.bf16.gmra.mxu0 %v1009
    %v1684 = vpop.f32.mrf.mxu0
    %v1685 = vadd.f32 %v1636, %v1684
    %v1686 = vpop.f32.mrf.mxu0
    %v1687 = vadd.f32 %v1638, %v1686
    %1688 = vmatmul.bf16.gmra.mxu0 %v1012
    %v1689 = vpop.f32.mrf.mxu0
    %v1690 = vadd.f32 %v1641, %v1689
    %v1691 = vpop.f32.mrf.mxu0
    %v1692 = vadd.f32 %v1643, %v1691
    %1693 = vmatmul.bf16.gmra.mxu0 %v1015
    %v1694 = vpop.f32.mrf.mxu0
    %v1695 = vadd.f32 %v1646, %v1694
    %v1696 = vpop.f32.mrf.mxu0
    %v1697 = vadd.f32 %v1648, %v1696
    %1698 = vmatmul.bf16.gmra.mxu0 %v1018
    %v1699 = vpop.f32.mrf.mxu0
    %v1700 = vadd.f32 %v1651, %v1699
    %v1701 = vpop.f32.mrf.mxu0
    %v1702 = vadd.f32 %v1653, %v1701
    %1703 = vmatmul.bf16.gmra.mxu0 %v1021
    %v1704 = vpop.f32.mrf.mxu0
    %v1705 = vadd.f32 %v1656, %v1704
    %v1706 = vpop.f32.mrf.mxu0
    %v1707 = vadd.f32 %v1658, %v1706
    %1708 = vdwg.mxu0
    %vm1709 = vcmp.gt.f32.partialorder %v1327, 0.0
    %vm1710 = vcmp.gt.f32.partialorder %v1670, 0.0
    %vm1711 = vcmp.gt.f32.partialorder %v1329, 0.0
    %vm1712 = vcmp.gt.f32.partialorder %v1672, 0.0
    %vm1713 = vcmp.gt.f32.partialorder %v1332, 0.0
    %vm1714 = vcmp.gt.f32.partialorder %v1675, 0.0
    %vm1715 = vcmp.gt.f32.partialorder %v1334, 0.0
    %vm1716 = vcmp.gt.f32.partialorder %v1677, 0.0
    %vm1717 = vcmp.gt.f32.partialorder %v1337, 0.0
    %vm1718 = vcmp.gt.f32.partialorder %v1680, 0.0
    %vm1719 = vcmp.gt.f32.partialorder %v1339, 0.0
    %vm1720 = vcmp.gt.f32.partialorder %v1682, 0.0
    %vm1721 = vcmp.gt.f32.partialorder %v1342, 0.0
    %vm1722 = vcmp.gt.f32.partialorder %v1685, 0.0
    %vm1723 = vcmp.gt.f32.partialorder %v1344, 0.0
    %vm1724 = vcmp.gt.f32.partialorder %v1687, 0.0
    %vm1725 = vcmp.gt.f32.partialorder %v1347, 0.0
    %vm1726 = vcmp.gt.f32.partialorder %v1690, 0.0
    %vm1727 = vcmp.gt.f32.partialorder %v1349, 0.0
    %vm1728 = vcmp.gt.f32.partialorder %v1692, 0.0
    %vm1729 = vcmp.gt.f32.partialorder %v1352, 0.0
    %vm1730 = vcmp.gt.f32.partialorder %v1695, 0.0
    %vm1731 = vcmp.gt.f32.partialorder %v1354, 0.0
    %vm1732 = vcmp.gt.f32.partialorder %v1697, 0.0
    %vm1733 = vcmp.gt.f32.partialorder %v1357, 0.0
    %vm1734 = vcmp.gt.f32.partialorder %v1700, 0.0
    %vm1735 = vcmp.gt.f32.partialorder %v1359, 0.0
    %vm1736 = vcmp.gt.f32.partialorder %v1702, 0.0
    %vm1737 = vcmp.gt.f32.partialorder %v1362, 0.0
    %vm1738 = vcmp.gt.f32.partialorder %v1705, 0.0
    %vm1739 = vcmp.gt.f32.partialorder %v1364, 0.0
    %vm1740 = vcmp.gt.f32.partialorder %v1707, 0.0
    %v1741 = vmul.f32 %v1327, 0.01
    %v1742 = vmul.f32 %v1670, 0.01
    %v1743 = vmul.f32 %v1329, 0.01
    %v1744 = vmul.f32 %v1672, 0.01
    %v1745 = vmul.f32 %v1332, 0.01
    %v1746 = vmul.f32 %v1675, 0.01
    %v1747 = vmul.f32 %v1334, 0.01
    %v1748 = vmul.f32 %v1677, 0.01
    %v1749 = vmul.f32 %v1337, 0.01
    %v1750 = vmul.f32 %v1680, 0.01
    %v1751 = vmul.f32 %v1339, 0.01
    %v1752 = vmul.f32 %v1682, 0.01
    %v1753 = vmul.f32 %v1342, 0.01
    %v1754 = vmul.f32 %v1685, 0.01
    %v1755 = vmul.f32 %v1344, 0.01
    %v1756 = vmul.f32 %v1687, 0.01
    %v1757 = vmul.f32 %v1347, 0.01
    %v1758 = vmul.f32 %v1690, 0.01
    %v1759 = vmul.f32 %v1349, 0.01
    %v1760 = vmul.f32 %v1692, 0.01
    %v1761 = vmul.f32 %v1352, 0.01
    %v1762 = vmul.f32 %v1695, 0.01
    %v1763 = vmul.f32 %v1354, 0.01
    %v1764 = vmul.f32 %v1697, 0.01
    %v1765 = vmul.f32 %v1357, 0.01
    %v1766 = vmul.f32 %v1700, 0.01
    %v1767 = vmul.f32 %v1359, 0.01
    %v1768 = vmul.f32 %v1702, 0.01
    %v1769 = vmul.f32 %v1362, 0.01
    %v1770 = vmul.f32 %v1705, 0.01
    %v1771 = vmul.f32 %v1364, 0.01
    %v1772 = vmul.f32 %v1707, 0.01
    %v1773 = vsel %vm1709, %v1327, %v1741
    %v1774 = vsel %vm1710, %v1670, %v1742
    %v1775 = vsel %vm1711, %v1329, %v1743
    %v1776 = vsel %vm1712, %v1672, %v1744
    %v1777 = vsel %vm1713, %v1332, %v1745
    %v1778 = vsel %vm1714, %v1675, %v1746
    %v1779 = vsel %vm1715, %v1334, %v1747
    %v1780 = vsel %vm1716, %v1677, %v1748
    %v1781 = vsel %vm1717, %v1337, %v1749
    %v1782 = vsel %vm1718, %v1680, %v1750
    %v1783 = vsel %vm1719, %v1339, %v1751
    %v1784 = vsel %vm1720, %v1682, %v1752
    %v1785 = vsel %vm1721, %v1342, %v1753
    %v1786 = vsel %vm1722, %v1685, %v1754
    %v1787 = vsel %vm1723, %v1344, %v1755
    %v1788 = vsel %vm1724, %v1687, %v1756
    %v1789 = vsel %vm1725, %v1347, %v1757
    %v1790 = vsel %vm1726, %v1690, %v1758
    %v1791 = vsel %vm1727, %v1349, %v1759
    %v1792 = vsel %vm1728, %v1692, %v1760
    %v1793 = vsel %vm1729, %v1352, %v1761
    %v1794 = vsel %vm1730, %v1695, %v1762
    %v1795 = vsel %vm1731, %v1354, %v1763
    %v1796 = vsel %vm1732, %v1697, %v1764
    %v1797 = vsel %vm1733, %v1357, %v1765
    %v1798 = vsel %vm1734, %v1700, %v1766
    %v1799 = vsel %vm1735, %v1359, %v1767
    %v1800 = vsel %vm1736, %v1702, %v1768
    %v1801 = vsel %vm1737, %v1362, %v1769
    %v1802 = vsel %vm1738, %v1705, %v1770
    %v1803 = vsel %vm1739, %v1364, %v1771
    %v1804 = vsel %vm1740, %v1707, %v1772
    %v1805 = vpack.c.bf16 %v1775, %v1773
    %v1806 = vpack.c.bf16 %v1776, %v1774
    %v1807 = vpack.c.bf16 %v1779, %v1777
    %v1808 = vpack.c.bf16 %v1780, %v1778
    %v1809 = vpack.c.bf16 %v1783, %v1781
    %v1810 = vpack.c.bf16 %v1784, %v1782
    %v1811 = vpack.c.bf16 %v1787, %v1785
    %v1812 = vpack.c.bf16 %v1788, %v1786
    %v1813 = vpack.c.bf16 %v1791, %v1789
    %v1814 = vpack.c.bf16 %v1792, %v1790
    %v1815 = vpack.c.bf16 %v1795, %v1793
    %v1816 = vpack.c.bf16 %v1796, %v1794
    %v1817 = vpack.c.bf16 %v1799, %v1797
    %v1818 = vpack.c.bf16 %v1800, %v1798
    %v1819 = vpack.c.bf16 %v1803, %v1801
    %v1820 = vpack.c.bf16 %v1804, %v1802
    %v1821 = vld [vmem:[#allocation2] sm:$0xff]
    %v1822 = vld [vmem:[#allocation2 + $0x8] sm:$0xff]
    %v1823 = vld [vmem:[#allocation2 + $0x10] sm:$0xff]
    %v1824 = vld [vmem:[#allocation2 + $0x18] sm:$0xff]
    %v1825 = vld [vmem:[#allocation2 + $0x20] sm:$0xff]
    %v1826 = vld [vmem:[#allocation2 + $0x28] sm:$0xff]
    %v1827 = vld [vmem:[#allocation2 + $0x30] sm:$0xff]
    %v1828 = vld [vmem:[#allocation2 + $0x38] sm:$0xff]
    %v1829 = vld [vmem:[#allocation2 + $0x40] sm:$0xff]
    %v1830 = vld [vmem:[#allocation2 + $0x48] sm:$0xff]
    %v1831 = vld [vmem:[#allocation2 + $0x50] sm:$0xff]
    %v1832 = vld [vmem:[#allocation2 + $0x58] sm:$0xff]
    %v1833 = vld [vmem:[#allocation2 + $0x60] sm:$0xff]
    %v1834 = vld [vmem:[#allocation2 + $0x68] sm:$0xff]
    %v1835 = vld [vmem:[#allocation2 + $0x70] sm:$0xff]
    %v1836 = vld [vmem:[#allocation2 + $0x78] sm:$0xff]
    %v1837 = vld [vmem:[#allocation2 + $0x80] sm:$0xff]
    %v1838 = vld [vmem:[#allocation2 + $0x88] sm:$0xff]
    %v1839 = vld [vmem:[#allocation2 + $0x90] sm:$0xff]
    %v1840 = vld [vmem:[#allocation2 + $0x98] sm:$0xff]
    %v1841 = vld [vmem:[#allocation2 + $0xa0] sm:$0xff]
    %v1842 = vld [vmem:[#allocation2 + $0xa8] sm:$0xff]
    %v1843 = vld [vmem:[#allocation2 + $0xb0] sm:$0xff]
    %v1844 = vld [vmem:[#allocation2 + $0xb8] sm:$0xff]
    %v1845 = vld [vmem:[#allocation2 + $0xc0] sm:$0xff]
    %v1846 = vld [vmem:[#allocation2 + $0xc8] sm:$0xff]
    %v1847 = vld [vmem:[#allocation2 + $0xd0] sm:$0xff]
    %v1848 = vld [vmem:[#allocation2 + $0xd8] sm:$0xff]
    %v1849 = vld [vmem:[#allocation2 + $0xe0] sm:$0xff]
    %v1850 = vld [vmem:[#allocation2 + $0xe8] sm:$0xff]
    %v1851 = vld [vmem:[#allocation2 + $0xf0] sm:$0xff]
    %v1852 = vld [vmem:[#allocation2 + $0xf8] sm:$0xff]
    %v1853 = vld [vmem:[%s4] sm:$0x3]
    %v1855 = vperm.slane %v1853, 0
    %v1856 = vperm.slane %v1853, 1
    %v1891 = vunpack.c.l.b16 %v1821
    %v1892 = vunpack.c.h.b16 %v1821
    %v1893 = vunpack.c.l.b16 %v1822
    %v1894 = vunpack.c.h.b16 %v1822
    %v1895 = vunpack.c.l.b16 %v1823
    %v1896 = vunpack.c.h.b16 %v1823
    %v1897 = vunpack.c.l.b16 %v1824
    %v1898 = vunpack.c.h.b16 %v1824
    %v1899 = vunpack.c.l.b16 %v1825
    %v1900 = vunpack.c.h.b16 %v1825
    %v1901 = vunpack.c.l.b16 %v1826
    %v1902 = vunpack.c.h.b16 %v1826
    %v1903 = vunpack.c.l.b16 %v1827
    %v1904 = vunpack.c.h.b16 %v1827
    %v1905 = vunpack.c.l.b16 %v1828
    %v1906 = vunpack.c.h.b16 %v1828
    %v1907 = vunpack.c.l.b16 %v1829
    %v1908 = vunpack.c.h.b16 %v1829
    %v1909 = vunpack.c.l.b16 %v1830
    %v1910 = vunpack.c.h.b16 %v1830
    %v1911 = vunpack.c.l.b16 %v1831
    %v1912 = vunpack.c.h.b16 %v1831
    %v1913 = vunpack.c.l.b16 %v1832
    %v1914 = vunpack.c.h.b16 %v1832
    %v1915 = vunpack.c.l.b16 %v1833
    %v1916 = vunpack.c.h.b16 %v1833
    %v1917 = vunpack.c.l.b16 %v1834
    %v1918 = vunpack.c.h.b16 %v1834
    %v1919 = vunpack.c.l.b16 %v1835
    %v1920 = vunpack.c.h.b16 %v1835
    %v1921 = vunpack.c.l.b16 %v1836
    %v1922 = vunpack.c.h.b16 %v1836
    %v1923 = vunpack.c.l.b16 %v1837
    %v1924 = vunpack.c.h.b16 %v1837
    %v1925 = vunpack.c.l.b16 %v1838
    %v1926 = vunpack.c.h.b16 %v1838
    %v1927 = vunpack.c.l.b16 %v1839
    %v1928 = vunpack.c.h.b16 %v1839
    %v1929 = vunpack.c.l.b16 %v1840
    %v1930 = vunpack.c.h.b16 %v1840
    %v1931 = vunpack.c.l.b16 %v1841
    %v1932 = vunpack.c.h.b16 %v1841
    %v1933 = vunpack.c.l.b16 %v1842
    %v1934 = vunpack.c.h.b16 %v1842
    %v1935 = vunpack.c.l.b16 %v1843
    %v1936 = vunpack.c.h.b16 %v1843
    %v1937 = vunpack.c.l.b16 %v1844
    %v1938 = vunpack.c.h.b16 %v1844
    %v1939 = vunpack.c.l.b16 %v1845
    %v1940 = vunpack.c.h.b16 %v1845
    %v1941 = vunpack.c.l.b16 %v1846
    %v1942 = vunpack.c.h.b16 %v1846
    %v1943 = vunpack.c.l.b16 %v1847
    %v1944 = vunpack.c.h.b16 %v1847
    %v1945 = vunpack.c.l.b16 %v1848
    %v1946 = vunpack.c.h.b16 %v1848
    %v1947 = vunpack.c.l.b16 %v1849
    %v1948 = vunpack.c.h.b16 %v1849
    %v1949 = vunpack.c.l.b16 %v1850
    %v1950 = vunpack.c.h.b16 %v1850
    %v1951 = vunpack.c.l.b16 %v1851
    %v1952 = vunpack.c.h.b16 %v1851
    %v1953 = vunpack.c.l.b16 %v1852
    %v1954 = vunpack.c.h.b16 %v1852
    %v1955 = vpack.c.b16 %v1893, %v1891
    %v1956 = vpack.c.b16 %v1894, %v1892
    %v1957 = vpack.c.b16 %v1897, %v1895
    %v1958 = vpack.c.b16 %v1898, %v1896
    %v1959 = vpack.c.b16 %v1901, %v1899
    %v1960 = vpack.c.b16 %v1902, %v1900
    %v1961 = vpack.c.b16 %v1905, %v1903
    %v1962 = vpack.c.b16 %v1906, %v1904
    %v1963 = vpack.c.b16 %v1909, %v1907
    %v1964 = vpack.c.b16 %v1910, %v1908
    %v1965 = vpack.c.b16 %v1913, %v1911
    %v1966 = vpack.c.b16 %v1914, %v1912
    %v1967 = vpack.c.b16 %v1917, %v1915
    %v1968 = vpack.c.b16 %v1918, %v1916
    %v1969 = vpack.c.b16 %v1921, %v1919
    %v1970 = vpack.c.b16 %v1922, %v1920
    %v1971 = vpack.c.b16 %v1925, %v1923
    %v1972 = vpack.c.b16 %v1926, %v1924
    %v1973 = vpack.c.b16 %v1929, %v1927
    %v1974 = vpack.c.b16 %v1930, %v1928
    %v1975 = vpack.c.b16 %v1933, %v1931
    %v1976 = vpack.c.b16 %v1934, %v1932
    %v1977 = vpack.c.b16 %v1937, %v1935
    %v1978 = vpack.c.b16 %v1938, %v1936
    %v1979 = vpack.c.b16 %v1941, %v1939
    %v1980 = vpack.c.b16 %v1942, %v1940
    %v1981 = vpack.c.b16 %v1945, %v1943
    %v1982 = vpack.c.b16 %v1946, %v1944
    %v1983 = vpack.c.b16 %v1949, %v1947
    %v1984 = vpack.c.b16 %v1950, %v1948
    %v1985 = vpack.c.b16 %v1953, %v1951
    %v1986 = vpack.c.b16 %v1954, %v1952
    %2019 = vmatpush.bf16.msra.mxu0 %v1969
    %2020 = vmatpush.bf16.msra.mxu0 %v1967
    %2021 = vmatpush.bf16.msra.mxu0 %v1965
    %2022 = vmatpush.bf16.msra.mxu0 %v1963
    %2023 = vmatpush.bf16.msra.mxu0 %v1961
    %2024 = vmatpush.bf16.msra.mxu0 %v1959
    %2025 = vmatpush.bf16.msra.mxu0 %v1957
    %2026 = vmatpush.bf16.msra.mxu0 %v1955
    %2027 = vmatmul.bf16.gmra.mxu0 %v1805
    %v2028 = vpop.f32.mrf.mxu0
    %v2029 = vadd.f32 %v1855, %v2028
    %v2030 = vpop.f32.mrf.mxu0
    %v2031 = vadd.f32 %v1855, %v2030
    %2032 = vmatmul.bf16.gmra.mxu0 %v1807
    %v2033 = vpop.f32.mrf.mxu0
    %v2034 = vadd.f32 %v1855, %v2033
    %v2035 = vpop.f32.mrf.mxu0
    %v2036 = vadd.f32 %v1855, %v2035
    %2037 = vmatmul.bf16.gmra.mxu0 %v1809
    %v2038 = vpop.f32.mrf.mxu0
    %v2039 = vadd.f32 %v1855, %v2038
    %v2040 = vpop.f32.mrf.mxu0
    %v2041 = vadd.f32 %v1855, %v2040
    %2042 = vmatmul.bf16.gmra.mxu0 %v1811
    %v2043 = vpop.f32.mrf.mxu0
    %v2044 = vadd.f32 %v1855, %v2043
    %v2045 = vpop.f32.mrf.mxu0
    %v2046 = vadd.f32 %v1855, %v2045
    %2047 = vmatmul.bf16.gmra.mxu0 %v1813
    %v2048 = vpop.f32.mrf.mxu0
    %v2049 = vadd.f32 %v1855, %v2048
    %v2050 = vpop.f32.mrf.mxu0
    %v2051 = vadd.f32 %v1855, %v2050
    %2052 = vmatmul.bf16.gmra.mxu0 %v1815
    %v2053 = vpop.f32.mrf.mxu0
    %v2054 = vadd.f32 %v1855, %v2053
    %v2055 = vpop.f32.mrf.mxu0
    %v2056 = vadd.f32 %v1855, %v2055
    %2057 = vmatmul.bf16.gmra.mxu0 %v1817
    %v2058 = vpop.f32.mrf.mxu0
    %v2059 = vadd.f32 %v1855, %v2058
    %v2060 = vpop.f32.mrf.mxu0
    %v2061 = vadd.f32 %v1855, %v2060
    %2062 = vmatmul.bf16.gmra.mxu0 %v1819
    %v2063 = vpop.f32.mrf.mxu0
    %v2064 = vadd.f32 %v1855, %v2063
    %v2065 = vpop.f32.mrf.mxu0
    %v2066 = vadd.f32 %v1855, %v2065
    %2067 = vdwg.mxu0
    %2068 = vmatpush.bf16.msra.mxu0 %v1985
    %2069 = vmatpush.bf16.msra.mxu0 %v1983
    %2070 = vmatpush.bf16.msra.mxu0 %v1981
    %2071 = vmatpush.bf16.msra.mxu0 %v1979
    %2072 = vmatpush.bf16.msra.mxu0 %v1977
    %2073 = vmatpush.bf16.msra.mxu0 %v1975
    %2074 = vmatpush.bf16.msra.mxu0 %v1973
    %2075 = vmatpush.bf16.msra.mxu0 %v1971
    %2076 = vmatmul.bf16.gmra.mxu0 %v1806
    %v2077 = vpop.f32.mrf.mxu0
    %v2078 = vadd.f32 %v2029, %v2077
    %v2079 = vpop.f32.mrf.mxu0
    %v2080 = vadd.f32 %v2031, %v2079
    %2081 = vmatmul.bf16.gmra.mxu0 %v1808
    %v2082 = vpop.f32.mrf.mxu0
    %v2083 = vadd.f32 %v2034, %v2082
    %v2084 = vpop.f32.mrf.mxu0
    %v2085 = vadd.f32 %v2036, %v2084
    %2086 = vmatmul.bf16.gmra.mxu0 %v1810
    %v2087 = vpop.f32.mrf.mxu0
    %v2088 = vadd.f32 %v2039, %v2087
    %v2089 = vpop.f32.mrf.mxu0
    %v2090 = vadd.f32 %v2041, %v2089
    %2091 = vmatmul.bf16.gmra.mxu0 %v1812
    %v2092 = vpop.f32.mrf.mxu0
    %v2093 = vadd.f32 %v2044, %v2092
    %v2094 = vpop.f32.mrf.mxu0
    %v2095 = vadd.f32 %v2046, %v2094
    %2096 = vmatmul.bf16.gmra.mxu0 %v1814
    %v2097 = vpop.f32.mrf.mxu0
    %v2098 = vadd.f32 %v2049, %v2097
    %v2099 = vpop.f32.mrf.mxu0
    %v2100 = vadd.f32 %v2051, %v2099
    %2101 = vmatmul.bf16.gmra.mxu0 %v1816
    %v2102 = vpop.f32.mrf.mxu0
    %v2103 = vadd.f32 %v2054, %v2102
    %v2104 = vpop.f32.mrf.mxu0
    %v2105 = vadd.f32 %v2056, %v2104
    %2106 = vmatmul.bf16.gmra.mxu0 %v1818
    %v2107 = vpop.f32.mrf.mxu0
    %v2108 = vadd.f32 %v2059, %v2107
    %v2109 = vpop.f32.mrf.mxu0
    %v2110 = vadd.f32 %v2061, %v2109
    %2111 = vmatmul.bf16.gmra.mxu0 %v1820
    %v2112 = vpop.f32.mrf.mxu0
    %v2113 = vadd.f32 %v2064, %v2112
    %v2114 = vpop.f32.mrf.mxu0
    %v2115 = vadd.f32 %v2066, %v2114
    %2116 = vdwg.mxu0
    %2117 = vmatpush.bf16.msra.mxu0 %v1970
    %2118 = vmatpush.bf16.msra.mxu0 %v1968
    %2119 = vmatpush.bf16.msra.mxu0 %v1966
    %2120 = vmatpush.bf16.msra.mxu0 %v1964
    %2121 = vmatpush.bf16.msra.mxu0 %v1962
    %2122 = vmatpush.bf16.msra.mxu0 %v1960
    %2123 = vmatpush.bf16.msra.mxu0 %v1958
    %2124 = vmatpush.bf16.msra.mxu0 %v1956
    %2125 = vmatmul.bf16.gmra.mxu0 %v1805
    %v2126 = vpop.f32.mrf.mxu0
    %v2127 = vadd.f32 %v1856, %v2126
    %v2128 = vpop.f32.mrf.mxu0
    %v2129 = vadd.f32 %v1856, %v2128
    %2130 = vmatmul.bf16.gmra.mxu0 %v1807
    %v2131 = vpop.f32.mrf.mxu0
    %v2132 = vadd.f32 %v1856, %v2131
    %v2133 = vpop.f32.mrf.mxu0
    %v2134 = vadd.f32 %v1856, %v2133
    %2135 = vmatmul.bf16.gmra.mxu0 %v1809
    %v2136 = vpop.f32.mrf.mxu0
    %v2137 = vadd.f32 %v1856, %v2136
    %v2138 = vpop.f32.mrf.mxu0
    %v2139 = vadd.f32 %v1856, %v2138
    %2140 = vmatmul.bf16.gmra.mxu0 %v1811
    %v2141 = vpop.f32.mrf.mxu0
    %v2142 = vadd.f32 %v1856, %v2141
    %v2143 = vpop.f32.mrf.mxu0
    %v2144 = vadd.f32 %v1856, %v2143
    %2145 = vmatmul.bf16.gmra.mxu0 %v1813
    %v2146 = vpop.f32.mrf.mxu0
    %v2147 = vadd.f32 %v1856, %v2146
    %v2148 = vpop.f32.mrf.mxu0
    %v2149 = vadd.f32 %v1856, %v2148
    %2150 = vmatmul.bf16.gmra.mxu0 %v1815
    %v2151 = vpop.f32.mrf.mxu0
    %v2152 = vadd.f32 %v1856, %v2151
    %v2153 = vpop.f32.mrf.mxu0
    %v2154 = vadd.f32 %v1856, %v2153
    %2155 = vmatmul.bf16.gmra.mxu0 %v1817
    %v2156 = vpop.f32.mrf.mxu0
    %v2157 = vadd.f32 %v1856, %v2156
    %v2158 = vpop.f32.mrf.mxu0
    %v2159 = vadd.f32 %v1856, %v2158
    %2160 = vmatmul.bf16.gmra.mxu0 %v1819
    %v2161 = vpop.f32.mrf.mxu0
    %v2162 = vadd.f32 %v1856, %v2161
    %v2163 = vpop.f32.mrf.mxu0
    %v2164 = vadd.f32 %v1856, %v2163
    %2165 = vdwg.mxu0
    %2166 = vmatpush.bf16.msra.mxu0 %v1986
    %2167 = vmatpush.bf16.msra.mxu0 %v1984
    %2168 = vmatpush.bf16.msra.mxu0 %v1982
    %2169 = vmatpush.bf16.msra.mxu0 %v1980
    %2170 = vmatpush.bf16.msra.mxu0 %v1978
    %2171 = vmatpush.bf16.msra.mxu0 %v1976
    %2172 = vmatpush.bf16.msra.mxu0 %v1974
    %2173 = vmatpush.bf16.msra.mxu0 %v1972
    %2174 = vmatmul.bf16.gmra.mxu0 %v1806
    %v2175 = vpop.f32.mrf.mxu0
    %v2176 = vadd.f32 %v2127, %v2175
    %v2177 = vpop.f32.mrf.mxu0
    %v2178 = vadd.f32 %v2129, %v2177
    %2179 = vmatmul.bf16.gmra.mxu0 %v1808
    %v2180 = vpop.f32.mrf.mxu0
    %v2181 = vadd.f32 %v2132, %v2180
    %v2182 = vpop.f32.mrf.mxu0
    %v2183 = vadd.f32 %v2134, %v2182
    %2184 = vmatmul.bf16.gmra.mxu0 %v1810
    %v2185 = vpop.f32.mrf.mxu0
    %v2186 = vadd.f32 %v2137, %v2185
    %v2187 = vpop.f32.mrf.mxu0
    %v2188 = vadd.f32 %v2139, %v2187
    %2189 = vmatmul.bf16.gmra.mxu0 %v1812
    %v2190 = vpop.f32.mrf.mxu0
    %v2191 = vadd.f32 %v2142, %v2190
    %v2192 = vpop.f32.mrf.mxu0
    %v2193 = vadd.f32 %v2144, %v2192
    %2194 = vmatmul.bf16.gmra.mxu0 %v1814
    %v2195 = vpop.f32.mrf.mxu0
    %v2196 = vadd.f32 %v2147, %v2195
    %v2197 = vpop.f32.mrf.mxu0
    %v2198 = vadd.f32 %v2149, %v2197
    %2199 = vmatmul.bf16.gmra.mxu0 %v1816
    %v2200 = vpop.f32.mrf.mxu0
    %v2201 = vadd.f32 %v2152, %v2200
    %v2202 = vpop.f32.mrf.mxu0
    %v2203 = vadd.f32 %v2154, %v2202
    %2204 = vmatmul.bf16.gmra.mxu0 %v1818
    %v2205 = vpop.f32.mrf.mxu0
    %v2206 = vadd.f32 %v2157, %v2205
    %v2207 = vpop.f32.mrf.mxu0
    %v2208 = vadd.f32 %v2159, %v2207
    %2209 = vmatmul.bf16.gmra.mxu0 %v1820
    %v2210 = vpop.f32.mrf.mxu0
    %v2211 = vadd.f32 %v2162, %v2210
    %v2212 = vpop.f32.mrf.mxu0
    %v2213 = vadd.f32 %v2164, %v2212
    %2214 = vdwg.mxu0
    %vm2215 = vcmp.gt.f32.partialorder %v2078, 0.0
    %vm2216 = vcmp.gt.f32.partialorder %v2176, 0.0
    %vm2217 = vcmp.gt.f32.partialorder %v2080, 0.0
    %vm2218 = vcmp.gt.f32.partialorder %v2178, 0.0
    %vm2219 = vcmp.gt.f32.partialorder %v2083, 0.0
    %vm2220 = vcmp.gt.f32.partialorder %v2181, 0.0
    %vm2221 = vcmp.gt.f32.partialorder %v2085, 0.0
    %vm2222 = vcmp.gt.f32.partialorder %v2183, 0.0
    %vm2223 = vcmp.gt.f32.partialorder %v2088, 0.0
    %vm2224 = vcmp.gt.f32.partialorder %v2186, 0.0
    %vm2225 = vcmp.gt.f32.partialorder %v2090, 0.0
    %vm2226 = vcmp.gt.f32.partialorder %v2188, 0.0
    %vm2227 = vcmp.gt.f32.partialorder %v2093, 0.0
    %vm2228 = vcmp.gt.f32.partialorder %v2191, 0.0
    %vm2229 = vcmp.gt.f32.partialorder %v2095, 0.0
    %vm2230 = vcmp.gt.f32.partialorder %v2193, 0.0
    %vm2231 = vcmp.gt.f32.partialorder %v2098, 0.0
    %vm2232 = vcmp.gt.f32.partialorder %v2196, 0.0
    %vm2233 = vcmp.gt.f32.partialorder %v2100, 0.0
    %vm2234 = vcmp.gt.f32.partialorder %v2198, 0.0
    %vm2235 = vcmp.gt.f32.partialorder %v2103, 0.0
    %vm2236 = vcmp.gt.f32.partialorder %v2201, 0.0
    %vm2237 = vcmp.gt.f32.partialorder %v2105, 0.0
    %vm2238 = vcmp.gt.f32.partialorder %v2203, 0.0
    %vm2239 = vcmp.gt.f32.partialorder %v2108, 0.0
    %vm2240 = vcmp.gt.f32.partialorder %v2206, 0.0
    %vm2241 = vcmp.gt.f32.partialorder %v2110, 0.0
    %vm2242 = vcmp.gt.f32.partialorder %v2208, 0.0
    %vm2243 = vcmp.gt.f32.partialorder %v2113, 0.0
    %vm2244 = vcmp.gt.f32.partialorder %v2211, 0.0
    %vm2245 = vcmp.gt.f32.partialorder %v2115, 0.0
    %vm2246 = vcmp.gt.f32.partialorder %v2213, 0.0
    %v2247 = vmul.f32 %v2078, 0.01
    %v2248 = vmul.f32 %v2176, 0.01
    %v2249 = vmul.f32 %v2080, 0.01
    %v2250 = vmul.f32 %v2178, 0.01
    %v2251 = vmul.f32 %v2083, 0.01
    %v2252 = vmul.f32 %v2181, 0.01
    %v2253 = vmul.f32 %v2085, 0.01
    %v2254 = vmul.f32 %v2183, 0.01
    %v2255 = vmul.f32 %v2088, 0.01
    %v2256 = vmul.f32 %v2186, 0.01
    %v2257 = vmul.f32 %v2090, 0.01
    %v2258 = vmul.f32 %v2188, 0.01
    %v2259 = vmul.f32 %v2093, 0.01
    %v2260 = vmul.f32 %v2191, 0.01
    %v2261 = vmul.f32 %v2095, 0.01
    %v2262 = vmul.f32 %v2193, 0.01
    %v2263 = vmul.f32 %v2098, 0.01
    %v2264 = vmul.f32 %v2196, 0.01
    %v2265 = vmul.f32 %v2100, 0.01
    %v2266 = vmul.f32 %v2198, 0.01
    %v2267 = vmul.f32 %v2103, 0.01
    %v2268 = vmul.f32 %v2201, 0.01
    %v2269 = vmul.f32 %v2105, 0.01
    %v2270 = vmul.f32 %v2203, 0.01
    %v2271 = vmul.f32 %v2108, 0.01
    %v2272 = vmul.f32 %v2206, 0.01
    %v2273 = vmul.f32 %v2110, 0.01
    %v2274 = vmul.f32 %v2208, 0.01
    %v2275 = vmul.f32 %v2113, 0.01
    %v2276 = vmul.f32 %v2211, 0.01
    %v2277 = vmul.f32 %v2115, 0.01
    %v2278 = vmul.f32 %v2213, 0.01
    %v2279 = vsel %vm2215, %v2078, %v2247
    %v2280 = vsel %vm2216, %v2176, %v2248
    %v2281 = vsel %vm2217, %v2080, %v2249
    %v2282 = vsel %vm2218, %v2178, %v2250
    %v2283 = vsel %vm2219, %v2083, %v2251
    %v2284 = vsel %vm2220, %v2181, %v2252
    %v2285 = vsel %vm2221, %v2085, %v2253
    %v2286 = vsel %vm2222, %v2183, %v2254
    %v2287 = vsel %vm2223, %v2088, %v2255
    %v2288 = vsel %vm2224, %v2186, %v2256
    %v2289 = vsel %vm2225, %v2090, %v2257
    %v2290 = vsel %vm2226, %v2188, %v2258
    %v2291 = vsel %vm2227, %v2093, %v2259
    %v2292 = vsel %vm2228, %v2191, %v2260
    %v2293 = vsel %vm2229, %v2095, %v2261
    %v2294 = vsel %vm2230, %v2193, %v2262
    %v2295 = vsel %vm2231, %v2098, %v2263
    %v2296 = vsel %vm2232, %v2196, %v2264
    %v2297 = vsel %vm2233, %v2100, %v2265
    %v2298 = vsel %vm2234, %v2198, %v2266
    %v2299 = vsel %vm2235, %v2103, %v2267
    %v2300 = vsel %vm2236, %v2201, %v2268
    %v2301 = vsel %vm2237, %v2105, %v2269
    %v2302 = vsel %vm2238, %v2203, %v2270
    %v2303 = vsel %vm2239, %v2108, %v2271
    %v2304 = vsel %vm2240, %v2206, %v2272
    %v2305 = vsel %vm2241, %v2110, %v2273
    %v2306 = vsel %vm2242, %v2208, %v2274
    %v2307 = vsel %vm2243, %v2113, %v2275
    %v2308 = vsel %vm2244, %v2211, %v2276
    %v2309 = vsel %vm2245, %v2115, %v2277
    %v2310 = vsel %vm2246, %v2213, %v2278
    %v2311 = vpack.c.bf16 %v2281, %v2279
    %v2312 = vpack.c.bf16 %v2282, %v2280
    %v2313 = vpack.c.bf16 %v2285, %v2283
    %v2314 = vpack.c.bf16 %v2286, %v2284
    %v2315 = vpack.c.bf16 %v2289, %v2287
    %v2316 = vpack.c.bf16 %v2290, %v2288
    %v2317 = vpack.c.bf16 %v2293, %v2291
    %v2318 = vpack.c.bf16 %v2294, %v2292
    %v2319 = vpack.c.bf16 %v2297, %v2295
    %v2320 = vpack.c.bf16 %v2298, %v2296
    %v2321 = vpack.c.bf16 %v2301, %v2299
    %v2322 = vpack.c.bf16 %v2302, %v2300
    %v2323 = vpack.c.bf16 %v2305, %v2303
    %v2324 = vpack.c.bf16 %v2306, %v2304
    %v2325 = vpack.c.bf16 %v2309, %v2307
    %v2326 = vpack.c.bf16 %v2310, %v2308
    %v2327 = vld [vmem:[#allocation5] sm:$0xf]
    %v2328 = vld [vmem:[#allocation5 + $0x4] sm:$0xf]
    %v2329 = vld [vmem:[#allocation5 + $0x8] sm:$0xf]
    %v2330 = vld [vmem:[#allocation5 + $0xc] sm:$0xf]
    %v2331 = vld [vmem:[#allocation5 + $0x10] sm:$0xf]
    %v2332 = vld [vmem:[#allocation5 + $0x14] sm:$0xf]
    %v2333 = vld [vmem:[#allocation5 + $0x18] sm:$0xf]
    %v2334 = vld [vmem:[#allocation5 + $0x1c] sm:$0xf]
    %v2335 = vld [vmem:[#allocation5 + $0x20] sm:$0xf]
    %v2336 = vld [vmem:[#allocation5 + $0x24] sm:$0xf]
    %v2337 = vld [vmem:[#allocation5 + $0x28] sm:$0xf]
    %v2338 = vld [vmem:[#allocation5 + $0x2c] sm:$0xf]
    %v2339 = vld [vmem:[#allocation5 + $0x30] sm:$0xf]
    %v2340 = vld [vmem:[#allocation5 + $0x34] sm:$0xf]
    %v2341 = vld [vmem:[#allocation5 + $0x38] sm:$0xf]
    %v2342 = vld [vmem:[#allocation5 + $0x3c] sm:$0xf]
    %v2343 = vld [vmem:[#allocation5 + $0x40] sm:$0xf]
    %v2344 = vld [vmem:[#allocation5 + $0x44] sm:$0xf]
    %v2345 = vld [vmem:[#allocation5 + $0x48] sm:$0xf]
    %v2346 = vld [vmem:[#allocation5 + $0x4c] sm:$0xf]
    %v2347 = vld [vmem:[#allocation5 + $0x50] sm:$0xf]
    %v2348 = vld [vmem:[#allocation5 + $0x54] sm:$0xf]
    %v2349 = vld [vmem:[#allocation5 + $0x58] sm:$0xf]
    %v2350 = vld [vmem:[#allocation5 + $0x5c] sm:$0xf]
    %v2351 = vld [vmem:[#allocation5 + $0x60] sm:$0xf]
    %v2352 = vld [vmem:[#allocation5 + $0x64] sm:$0xf]
    %v2353 = vld [vmem:[#allocation5 + $0x68] sm:$0xf]
    %v2354 = vld [vmem:[#allocation5 + $0x6c] sm:$0xf]
    %v2355 = vld [vmem:[#allocation5 + $0x70] sm:$0xf]
    %v2356 = vld [vmem:[#allocation5 + $0x74] sm:$0xf]
    %v2357 = vld [vmem:[#allocation5 + $0x78] sm:$0xf]
    %v2358 = vld [vmem:[#allocation5 + $0x7c] sm:$0xf]
    %v2359 = vld [vmem:[%s6] sm:$0x1]
    %v2361 = vperm.slane %v2359, 0
    %v2395 = vunpack.c.l.b16 %v2327
    %v2396 = vunpack.c.l.b16 %v2328
    %v2397 = vunpack.c.l.b16 %v2329
    %v2398 = vunpack.c.l.b16 %v2330
    %v2399 = vunpack.c.l.b16 %v2331
    %v2400 = vunpack.c.l.b16 %v2332
    %v2401 = vunpack.c.l.b16 %v2333
    %v2402 = vunpack.c.l.b16 %v2334
    %v2403 = vunpack.c.l.b16 %v2335
    %v2404 = vunpack.c.l.b16 %v2336
    %v2405 = vunpack.c.l.b16 %v2337
    %v2406 = vunpack.c.l.b16 %v2338
    %v2407 = vunpack.c.l.b16 %v2339
    %v2408 = vunpack.c.l.b16 %v2340
    %v2409 = vunpack.c.l.b16 %v2341
    %v2410 = vunpack.c.l.b16 %v2342
    %v2411 = vunpack.c.l.b16 %v2343
    %v2412 = vunpack.c.l.b16 %v2344
    %v2413 = vunpack.c.l.b16 %v2345
    %v2414 = vunpack.c.l.b16 %v2346
    %v2415 = vunpack.c.l.b16 %v2347
    %v2416 = vunpack.c.l.b16 %v2348
    %v2417 = vunpack.c.l.b16 %v2349
    %v2418 = vunpack.c.l.b16 %v2350
    %v2419 = vunpack.c.l.b16 %v2351
    %v2420 = vunpack.c.l.b16 %v2352
    %v2421 = vunpack.c.l.b16 %v2353
    %v2422 = vunpack.c.l.b16 %v2354
    %v2423 = vunpack.c.l.b16 %v2355
    %v2424 = vunpack.c.l.b16 %v2356
    %v2425 = vunpack.c.l.b16 %v2357
    %v2426 = vunpack.c.l.b16 %v2358
    %v2427 = vpack.c.b16 %v2396, %v2395
    %v2428 = vpack.c.b16 %v2398, %v2397
    %v2429 = vpack.c.b16 %v2400, %v2399
    %v2430 = vpack.c.b16 %v2402, %v2401
    %v2431 = vpack.c.b16 %v2404, %v2403
    %v2432 = vpack.c.b16 %v2406, %v2405
    %v2433 = vpack.c.b16 %v2408, %v2407
    %v2434 = vpack.c.b16 %v2410, %v2409
    %v2435 = vpack.c.b16 %v2412, %v2411
    %v2436 = vpack.c.b16 %v2414, %v2413
    %v2437 = vpack.c.b16 %v2416, %v2415
    %v2438 = vpack.c.b16 %v2418, %v2417
    %v2439 = vpack.c.b16 %v2420, %v2419
    %v2440 = vpack.c.b16 %v2422, %v2421
    %v2441 = vpack.c.b16 %v2424, %v2423
    %v2442 = vpack.c.b16 %v2426, %v2425
    %2459 = vmatpush.bf16.msra.mxu0 %v2434
    %2460 = vmatpush.bf16.msra.mxu0 %v2433
    %2461 = vmatpush.bf16.msra.mxu0 %v2432
    %2462 = vmatpush.bf16.msra.mxu0 %v2431
    %2463 = vmatpush.bf16.msra.mxu0 %v2430
    %2464 = vmatpush.bf16.msra.mxu0 %v2429
    %2465 = vmatpush.bf16.msra.mxu0 %v2428
    %2466 = vmatpush.bf16.msra.mxu0 %v2427
    %2467 = vmatmul.bf16.gmra.mxu0 %v2311
    %v2468 = vpop.f32.mrf.mxu0
    %v2469 = vadd.f32 %v2361, %v2468
    %v2470 = vpop.f32.mrf.mxu0
    %v2471 = vadd.f32 %v2361, %v2470
    %2472 = vmatmul.bf16.gmra.mxu0 %v2313
    %v2473 = vpop.f32.mrf.mxu0
    %v2474 = vadd.f32 %v2361, %v2473
    %v2475 = vpop.f32.mrf.mxu0
    %v2476 = vadd.f32 %v2361, %v2475
    %2477 = vmatmul.bf16.gmra.mxu0 %v2315
    %v2478 = vpop.f32.mrf.mxu0
    %v2479 = vadd.f32 %v2361, %v2478
    %v2480 = vpop.f32.mrf.mxu0
    %v2481 = vadd.f32 %v2361, %v2480
    %2482 = vmatmul.bf16.gmra.mxu0 %v2317
    %v2483 = vpop.f32.mrf.mxu0
    %v2484 = vadd.f32 %v2361, %v2483
    %v2485 = vpop.f32.mrf.mxu0
    %v2486 = vadd.f32 %v2361, %v2485
    %2487 = vmatmul.bf16.gmra.mxu0 %v2319
    %v2488 = vpop.f32.mrf.mxu0
    %v2489 = vadd.f32 %v2361, %v2488
    %v2490 = vpop.f32.mrf.mxu0
    %v2491 = vadd.f32 %v2361, %v2490
    %2492 = vmatmul.bf16.gmra.mxu0 %v2321
    %v2493 = vpop.f32.mrf.mxu0
    %v2494 = vadd.f32 %v2361, %v2493
    %v2495 = vpop.f32.mrf.mxu0
    %v2496 = vadd.f32 %v2361, %v2495
    %2497 = vmatmul.bf16.gmra.mxu0 %v2323
    %v2498 = vpop.f32.mrf.mxu0
    %v2499 = vadd.f32 %v2361, %v2498
    %v2500 = vpop.f32.mrf.mxu0
    %v2501 = vadd.f32 %v2361, %v2500
    %2502 = vmatmul.bf16.gmra.mxu0 %v2325
    %v2503 = vpop.f32.mrf.mxu0
    %v2504 = vadd.f32 %v2361, %v2503
    %v2505 = vpop.f32.mrf.mxu0
    %v2506 = vadd.f32 %v2361, %v2505
    %2507 = vdwg.mxu0
    %2508 = vmatpush.bf16.msra.mxu0 %v2442
    %2509 = vmatpush.bf16.msra.mxu0 %v2441
    %2510 = vmatpush.bf16.msra.mxu0 %v2440
    %2511 = vmatpush.bf16.msra.mxu0 %v2439
    %2512 = vmatpush.bf16.msra.mxu0 %v2438
    %2513 = vmatpush.bf16.msra.mxu0 %v2437
    %2514 = vmatpush.bf16.msra.mxu0 %v2436
    %2515 = vmatpush.bf16.msra.mxu0 %v2435
    %2516 = vmatmul.bf16.gmra.mxu0 %v2312
    %v2517 = vpop.f32.mrf.mxu0
    %v2518 = vadd.f32 %v2469, %v2517
    %v2519 = vpop.f32.mrf.mxu0
    %v2520 = vadd.f32 %v2471, %v2519
    %2521 = vmatmul.bf16.gmra.mxu0 %v2314
    %v2522 = vpop.f32.mrf.mxu0
    %v2523 = vadd.f32 %v2474, %v2522
    %v2524 = vpop.f32.mrf.mxu0
    %v2525 = vadd.f32 %v2476, %v2524
    %2526 = vmatmul.bf16.gmra.mxu0 %v2316
    %v2527 = vpop.f32.mrf.mxu0
    %v2528 = vadd.f32 %v2479, %v2527
    %v2529 = vpop.f32.mrf.mxu0
    %v2530 = vadd.f32 %v2481, %v2529
    %2531 = vmatmul.bf16.gmra.mxu0 %v2318
    %v2532 = vpop.f32.mrf.mxu0
    %v2533 = vadd.f32 %v2484, %v2532
    %v2534 = vpop.f32.mrf.mxu0
    %v2535 = vadd.f32 %v2486, %v2534
    %2536 = vmatmul.bf16.gmra.mxu0 %v2320
    %v2537 = vpop.f32.mrf.mxu0
    %v2538 = vadd.f32 %v2489, %v2537
    %v2539 = vpop.f32.mrf.mxu0
    %v2540 = vadd.f32 %v2491, %v2539
    %2541 = vmatmul.bf16.gmra.mxu0 %v2322
    %v2542 = vpop.f32.mrf.mxu0
    %v2543 = vadd.f32 %v2494, %v2542
    %v2544 = vpop.f32.mrf.mxu0
    %v2545 = vadd.f32 %v2496, %v2544
    %2546 = vmatmul.bf16.gmra.mxu0 %v2324
    %v2547 = vpop.f32.mrf.mxu0
    %v2548 = vadd.f32 %v2499, %v2547
    %v2549 = vpop.f32.mrf.mxu0
    %v2550 = vadd.f32 %v2501, %v2549
    %2551 = vmatmul.bf16.gmra.mxu0 %v2326
    %v2552 = vpop.f32.mrf.mxu0
    %v2553 = vadd.f32 %v2504, %v2552
    %v2554 = vpop.f32.mrf.mxu0
    %v2555 = vadd.f32 %v2506, %v2554
    %2556 = vdwg.mxu0
    %vm2557 = vcmp.gt.f32.partialorder %v2518, 0.0
    %vm2558 = vcmp.gt.f32.partialorder %v2520, 0.0
    %vm2559 = vcmp.gt.f32.partialorder %v2523, 0.0
    %vm2560 = vcmp.gt.f32.partialorder %v2525, 0.0
    %vm2561 = vcmp.gt.f32.partialorder %v2528, 0.0
    %vm2562 = vcmp.gt.f32.partialorder %v2530, 0.0
    %vm2563 = vcmp.gt.f32.partialorder %v2533, 0.0
    %vm2564 = vcmp.gt.f32.partialorder %v2535, 0.0
    %vm2565 = vcmp.gt.f32.partialorder %v2538, 0.0
    %vm2566 = vcmp.gt.f32.partialorder %v2540, 0.0
    %vm2567 = vcmp.gt.f32.partialorder %v2543, 0.0
    %vm2568 = vcmp.gt.f32.partialorder %v2545, 0.0
    %vm2569 = vcmp.gt.f32.partialorder %v2548, 0.0
    %vm2570 = vcmp.gt.f32.partialorder %v2550, 0.0
    %vm2571 = vcmp.gt.f32.partialorder %v2553, 0.0
    %vm2572 = vcmp.gt.f32.partialorder %v2555, 0.0
    %v2573 = vmul.f32 %v2518, 0.01
    %v2574 = vmul.f32 %v2520, 0.01
    %v2575 = vmul.f32 %v2523, 0.01
    %v2576 = vmul.f32 %v2525, 0.01
    %v2577 = vmul.f32 %v2528, 0.01
    %v2578 = vmul.f32 %v2530, 0.01
    %v2579 = vmul.f32 %v2533, 0.01
    %v2580 = vmul.f32 %v2535, 0.01
    %v2581 = vmul.f32 %v2538, 0.01
    %v2582 = vmul.f32 %v2540, 0.01
    %v2583 = vmul.f32 %v2543, 0.01
    %v2584 = vmul.f32 %v2545, 0.01
    %v2585 = vmul.f32 %v2548, 0.01
    %v2586 = vmul.f32 %v2550, 0.01
    %v2587 = vmul.f32 %v2553, 0.01
    %v2588 = vmul.f32 %v2555, 0.01
    %v2589 = vsel %vm2557, %v2518, %v2573
    %v2590 = vsel %vm2558, %v2520, %v2574
    %v2591 = vsel %vm2559, %v2523, %v2575
    %v2592 = vsel %vm2560, %v2525, %v2576
    %v2593 = vsel %vm2561, %v2528, %v2577
    %v2594 = vsel %vm2562, %v2530, %v2578
    %v2595 = vsel %vm2563, %v2533, %v2579
    %v2596 = vsel %vm2564, %v2535, %v2580
    %v2597 = vsel %vm2565, %v2538, %v2581
    %v2598 = vsel %vm2566, %v2540, %v2582
    %v2599 = vsel %vm2567, %v2543, %v2583
    %v2600 = vsel %vm2568, %v2545, %v2584
    %v2601 = vsel %vm2569, %v2548, %v2585
    %v2602 = vsel %vm2570, %v2550, %v2586
    %v2603 = vsel %vm2571, %v2553, %v2587
    %v2604 = vsel %vm2572, %v2555, %v2588
    %2605 = vst [vmem:[#allocation7] sm:$0xff] %v2589
    %2606 = vst [vmem:[#allocation7 + $0x8] sm:$0xff] %v2590
    %2607 = vst [vmem:[#allocation7 + $0x10] sm:$0xff] %v2591
    %2608 = vst [vmem:[#allocation7 + $0x18] sm:$0xff] %v2592
    %2609 = vst [vmem:[#allocation7 + $0x20] sm:$0xff] %v2593
    %2610 = vst [vmem:[#allocation7 + $0x28] sm:$0xff] %v2594
    %2611 = vst [vmem:[#allocation7 + $0x30] sm:$0xff] %v2595
    %2612 = vst [vmem:[#allocation7 + $0x38] sm:$0xff] %v2596
    %2613 = vst [vmem:[#allocation7 + $0x40] sm:$0xff] %v2597
    %2614 = vst [vmem:[#allocation7 + $0x48] sm:$0xff] %v2598
    %2615 = vst [vmem:[#allocation7 + $0x50] sm:$0xff] %v2599
    %2616 = vst [vmem:[#allocation7 + $0x58] sm:$0xff] %v2600
    %2617 = vst [vmem:[#allocation7 + $0x60] sm:$0xff] %v2601
    %2618 = vst [vmem:[#allocation7 + $0x68] sm:$0xff] %v2602
    %2619 = vst [vmem:[#allocation7 + $0x70] sm:$0xff] %v2603
    %2620 = vst [vmem:[#allocation7 + $0x78] sm:$0xff] %v2604
    // Predicated region
    $region38: #{tpu_custom_call.1} parent=1 // pred_check
      _
    $region39: #{tpu_custom_call.1} parent=1 // pred_check_branch
      %2622 = sbr.rel (0) target = $region41
    $region40: #{tpu_custom_call.1} parent=1 // pred_region
      %2624 = vsyncadd [#allocation4], 0
      %s2625 = sshll.u32 [#allocation7], 4
      %s2626 = int_to_ptr.vmem [resolvable:$true] %s2625
      %s2627 = sshll.u32 %s7, 4
      %s2628 = int_to_ptr.hbm [resolvable:$true] %s2627
      %2633 = dma.vmem_to_hbm [thread:$0]  %s2626, 2048, %s2628, [#allocation4], 128, 128, 8
    $region41: #{tpu_custom_call.1} parent=1 // pred_fallthru
      _
    // Predicated region
    $region42: #{tpu_custom_call.1} parent=1 // pred_check
      _
    $region43: #{tpu_custom_call.1} parent=1 // pred_check_branch
      %2635 = sbr.rel (0) target = $region45
    $region44: #{tpu_custom_call.1} parent=1 // pred_region
      %2637 = dma.done [#allocation4], 2048
    $region45: #{tpu_custom_call.1} parent=1 // pred_fallthru
      _
    %2638 = vsyncpa [#allocation3], 1
    %2639 = vsyncpa [#allocation6], 1
    %2640 = vsyncpa [#allocation4], 1

</llo_original>
